<compile_context>
chip_gen: v6e
topology: v6e:2x2x1
jax: 0.10.0
libtpu: 0.0.40
codegen_flags: <defaults>
</compile_context>

<pallas_src>
import functools

import jax
import jax.numpy as jnp
from jax.experimental import pallas as pl
from jax.experimental.pallas import tpu as pltpu


def _round_up(x, m):
    return (x + m - 1) // m * m


def _cln_kernel(x_ref, mem_ref,
                w1_ref, b1_ref,            # fused first layer of both MLPs
                w2g_ref, w2b_ref,          # second layers (biases folded into gamma/beta)
                gamma_ref, beta_ref,       # gamma + b2g, beta + b2b
                o_ref, *, eps, d_real, d_pad):
    f32 = jnp.float32

    x = x_ref[...].astype(f32)                       # (tm, Dp)  LN path stays f32
    mem = mem_ref[...].astype(jnp.bfloat16)          # cast in-kernel (saves an HBM pass)

    # hoist parameter rows: read once, broadcast once
    b1 = b1_ref[...].astype(f32)                     # (1, 2*Dp)
    gamma = gamma_ref[...].astype(f32)               # (1, Dp)  == gamma + b2_gamma
    beta = beta_ref[...].astype(f32)                 # (1, Dp)  == beta  + b2_beta

    # ---- fused first layer: one (tm,Kp) @ (Kp,2*Dp) bf16 MXU pass ----
    h = jnp.dot(mem, w1_ref[...], preferred_element_type=f32) + b1
    h = jnp.maximum(h, 0.0).astype(jnp.bfloat16)     # ReLU, back to bf16

    # ---- second layers (static 128-aligned lane slices of h) ----
    # TODO(synk): on 256x256-MXU parts (v6e/v7x) with d_pad == 128, fuse these two
    # matmuls into one block-diagonal (2*Dp, 2*Dp) pass to halve vmatmul issues.
    dgamma = jnp.dot(h[:, :d_pad], w2g_ref[...], preferred_element_type=f32)
    dbeta = jnp.dot(h[:, d_pad:], w2b_ref[...], preferred_element_type=f32)

    # ---- layer-norm statistics over the *real* feature width ----
    # padded x lanes are zero, so the plain sum is already the real sum
    mean = jnp.sum(x, axis=-1, keepdims=True) * f32(1.0 / d_real)
    xc = x - mean
    ssq = jnp.sum(xc * xc, axis=-1, keepdims=True)
    if d_pad != d_real:
        # padded lanes hold xc == -mean, contributing exactly (Dp-D)*mean^2;
        # remove analytically instead of building an iota lane mask
        ssq = ssq - f32(d_pad - d_real) * (mean * mean)
    # torch.std default is the unbiased estimator (ddof = 1)
    var = jnp.maximum(ssq * f32(1.0 / (d_real - 1)), 0.0)
    std = jnp.sqrt(var)

    denom = std + f32(eps)
    r = pl.reciprocal(denom, approx=True)            # EUP slot (≈ free)
    inv = r * (2.0 - denom * r)                      # one Newton step -> ~f32 accuracy

    out = (gamma + dgamma) * (xc * inv) + (beta + dbeta)
    o_ref[...] = out.astype(o_ref.dtype)


def conditional_layer_norm(x, memory, params, *, eps=1e-6, tm=512):
    """x: (B, S, D); memory: (B, S, K).  Returns (B, S, D)."""
    B, S, D = x.shape
    K = memory.shape[-1]
    assert D > 1, "unbiased std (ddof=1) needs d_model > 1"
    N = B * S

    D_pad = _round_up(D, 128)
    K_pad = _round_up(K, 128)

    # ---------- pack / pad parameters (host side, tiny, once) ----------
    def pad_mat(w, rows, cols):
        return jnp.pad(w, ((0, rows - w.shape[0]), (0, cols - w.shape[1])))

    def pad_row(v, cols):
        return jnp.pad(v, (0, cols - v.shape[0])).reshape(1, cols)

    w1 = jnp.concatenate(
        [pad_mat(params["w1g"], K_pad, D_pad), pad_mat(params["w1b"], K_pad, D_pad)],
        axis=1).astype(jnp.bfloat16)                         # (Kp, 2*Dp)
    b1 = jnp.concatenate(
        [pad_row(params["b1g"], D_pad), pad_row(params["b1b"], D_pad)],
        axis=1).astype(jnp.float32)                          # (1, 2*Dp)
    w2g = pad_mat(params["w2g"], D_pad, D_pad).astype(jnp.bfloat16)
    w2b = pad_mat(params["w2b"], D_pad, D_pad).astype(jnp.bfloat16)
    # fold second-layer biases into the affine params (zero numerics change)
    gamma_eff = pad_row(params["gamma"] + params["b2g"], D_pad).astype(jnp.float32)
    beta_eff = pad_row(params["beta"] + params["b2b"], D_pad).astype(jnp.float32)

    # ---------- VMEM budget (per-TensorCore) ----------
    try:
        cap = int(getattr(pltpu.get_tpu_info(), "vmem_capacity_bytes"))
    except Exception:
        cap = 64 << 20                 # assume the smallest (v7x per-TC) if unknown
    hard_cap = min(cap - (8 << 20), 112 << 20)   # headroom for compiler scratch
    budget = int(hard_cap * 0.85)

    x_b = x.dtype.itemsize
    m_b = memory.dtype.itemsize
    weight_bytes = sum(int(a.size) * a.dtype.itemsize
                       for a in (w1, b1, w2g, w2b, gamma_eff, beta_eff))

    def footprint(t):
        io = 2 * t * (2 * D_pad * x_b + K_pad * m_b)   # double-buffered x / out / mem tiles
        interm = t * (24 * D_pad + 4 * K_pad)          # in-kernel f32/bf16 temporaries
        return io + weight_bytes + interm              # weights single-buffered

    # bf16-friendly sublane tiling: keep tm a multiple of 16
    tm = min(_round_up(max(tm, 16), 16), _round_up(N, 16))
    while tm > 16 and footprint(tm) > budget:
        tm = max(16, tm - (128 if tm > 256 else 16))

    vmem_limit = int(min(max(footprint(tm) * 5 // 4, 32 << 20), hard_cap))
    # TODO(synk): for very large d_model (resident weights >> VMEM budget) add a
    # second "arbitrary" grid axis tiling the D (output) dimension of w1/w2.

    # ---------- activations: flatten; pad feature axes ONLY when misaligned ----------
    xr = x.reshape(N, D)
    mr = memory.reshape(N, K)
    if D_pad != D:
        xr = jnp.pad(xr, ((0, 0), (0, D_pad - D)))
    if K_pad != K:
        mr = jnp.pad(mr, ((0, 0), (0, K_pad - K)))

    grid = (pl.cdiv(N, tm),)          # ragged last block: Pallas masks the edge writes

    def build(single_buffer_weights):
        if single_buffer_weights:
            # resident weights never change across the grid -> single buffer
            const = lambda shape: pl.BlockSpec(
                shape, lambda i: (0, 0), pipeline_mode=pl.Buffered(buffer_count=1))
        else:
            const = lambda shape: pl.BlockSpec(shape, lambda i: (0, 0))
        return pl.pallas_call(
            functools.partial(_cln_kernel, eps=eps, d_real=D, d_pad=D_pad),
            out_shape=jax.ShapeDtypeStruct((N, D_pad), x.dtype),
            grid=grid,
            in_specs=[
                pl.BlockSpec((tm, D_pad), lambda i: (i, 0)),     # x rows
                pl.BlockSpec((tm, K_pad), lambda i: (i, 0)),     # memory rows
                const((K_pad, 2 * D_pad)), const((1, 2 * D_pad)),  # fused first layer
                const((D_pad, D_pad)), const((D_pad, D_pad)),       # second layers
                const((1, D_pad)), const((1, D_pad)),               # gamma_eff, beta_eff
            ],
            out_specs=pl.BlockSpec((tm, D_pad), lambda i: (i, 0)),
            compiler_params=pltpu.CompilerParams(
                dimension_semantics=("parallel",),
                vmem_limit_bytes=vmem_limit),
        )

    args = (xr, mr, w1, b1, w2g, w2b, gamma_eff, beta_eff)
    try:
        out2 = build(True)(*args)
    except Exception:
        # pipeline_mode=pl.Buffered(1) unsupported on this jax version -> default buffering
        out2 = build(False)(*args)

    if D_pad != D:
        out2 = out2[:, :D]
    return out2.reshape(B, S, D)


# ---------------- deterministic parameter init (synthetic) ----------------

def _xavier_uniform(key, fan_in, fan_out, dtype=jnp.float32):
    bound = (6.0 / (fan_in + fan_out)) ** 0.5
    # stored as (in, out) so the kernel can do  y = x @ W + b
    return jax.random.uniform(key, (fan_in, fan_out), dtype, -bound, bound)


def make_params(key, d_model, rm_num_slots, rm_d_model):
    # module's own shapes require d_model == rm_d_model for mlp_gamma to compose
    k1, k2, k3, k4 = jax.random.split(key, 4)
    K = rm_num_slots * rm_d_model
    return {
        # mlp_gamma: Linear(K -> d_model), ReLU, Linear(rm_d_model -> rm_d_model)
        "w1g": _xavier_uniform(k1, K, d_model),
        "b1g": jnp.full((d_model,), 0.1, jnp.float32),
        "w2g": _xavier_uniform(k2, rm_d_model, rm_d_model),
        "b2g": jnp.full((rm_d_model,), 0.1, jnp.float32),
        # mlp_beta: Linear(K -> d_model), ReLU, Linear(d_model -> d_model)
        "w1b": _xavier_uniform(k3, K, d_model),
        "b1b": jnp.full((d_model,), 0.1, jnp.float32),
        "w2b": _xavier_uniform(k4, d_model, d_model),
        "b2b": jnp.full((d_model,), 0.1, jnp.float32),
        # affine params passed to __init__ (gamma, beta) — synthetic values
        "gamma": jnp.ones((d_model,), jnp.float32),
        "beta": jnp.zeros((d_model,), jnp.float32),
    }


def _reference(x, memory, params, eps=1e-6, emulate_bf16=False):
    """Pure-JAX reference.  emulate_bf16=True mirrors the kernel's bf16 MXU inputs."""
    f32 = jnp.float32
    q = (lambda a: a.astype(jnp.bfloat16).astype(f32)) if emulate_bf16 else (
        lambda a: a.astype(f32))
    xf = x.astype(f32)
    m = q(memory.astype(f32))
    hg = jax.nn.relu(m @ q(params["w1g"]) + params["b1g"])
    hb = jax.nn.relu(m @ q(params["w1b"]) + params["b1b"])
    if emulate_bf16:
        hg, hb = q(hg), q(hb)
    dgamma = hg @ q(params["w2g"]) + params["b2g"]
    dbeta = hb @ q(params["w2b"]) + params["b2b"]
    mean = xf.mean(-1, keepdims=True)
    std = jnp.sqrt(xf.var(-1, keepdims=True, ddof=1))
    return (params["gamma"] + dgamma) * (xf - mean) / (std + eps) + (params["beta"] + dbeta)


def _check(B, S, d_model, rm_num_slots, rm_d_model, seed, tm=512):
    K = rm_num_slots * rm_d_model
    key = jax.random.PRNGKey(seed)
    kx, km, kp = jax.random.split(key, 3)
    x = jax.random.normal(kx, (B, S, d_model), jnp.float32)
    memory = jax.random.normal(km, (B, S, K), jnp.float32)
    params = make_params(kp, d_model, rm_num_slots, rm_d_model)

    out = conditional_layer_norm(x, memory, params, eps=1e-6, tm=tm)
    out = jax.block_until_ready(out)

    # compare against a reference that mirrors the kernel's bf16 MLP inputs;
    # tolerance covers bf16 rounding + accumulation-order differences
    ref = _reference(x, memory, params, eps=1e-6, emulate_bf16=True)
    assert out.shape == (B, S, d_model)
    err = float(jnp.max(jnp.abs(out - ref)))
    assert jnp.allclose(out, ref, atol=2e-2, rtol=2e-2), err


if __name__ == "__main__":
    # case 1: small unaligned shapes (D=32, K=64 -> padded to 128 lanes)
    _check(B=2, S=8, d_model=32, rm_num_slots=2, rm_d_model=32, seed=0)
    # case 2: 128-aligned feature dims (no host-side pad/slice) + ragged N edge block
    _check(B=2, S=9, d_model=128, rm_num_slots=2, rm_d_model=128, seed=1, tm=16)
    print("KERNEL_OK")
</pallas_src>

<mosaic_0001>
module attributes {stable_mosaic.version = 11 : i64} {
  func.func @_cln_kernel(%arg0: i32, %arg1: memref<16x128xf32, #tpu.memory_space<vmem>>, %arg2: memref<16x128xf32, #tpu.memory_space<vmem>>, %arg3: memref<128x256xbf16, #tpu.memory_space<vmem>>, %arg4: memref<1x256xf32, #tpu.memory_space<vmem>>, %arg5: memref<128x128xbf16, #tpu.memory_space<vmem>>, %arg6: memref<128x128xbf16, #tpu.memory_space<vmem>>, %arg7: memref<1x128xf32, #tpu.memory_space<vmem>>, %arg8: memref<1x128xf32, #tpu.memory_space<vmem>>, %arg9: memref<16x128xf32, #tpu.memory_space<vmem>>) attributes {dimension_semantics = [#tpu.dimension_semantics<parallel>], iteration_bounds = array<i64: 1>, scalar_prefetch = 0 : i64, scratch_operands = 0 : i64, tpu.core_type = #tpu.core_type<tc>, window_params = [{transform_indices = @transform_0, window_bounds = array<i64: 16, 128>}, {transform_indices = @transform_1, window_bounds = array<i64: 16, 128>}, {pipeline_mode = #tpu.pipeline_mode<synchronous>, transform_indices = @transform_2, window_bounds = array<i64: 128, 256>}, {pipeline_mode = #tpu.pipeline_mode<synchronous>, transform_indices = @transform_3, window_bounds = array<i64: 1, 256>}, {pipeline_mode = #tpu.pipeline_mode<synchronous>, transform_indices = @transform_4, window_bounds = array<i64: 128, 128>}, {pipeline_mode = #tpu.pipeline_mode<synchronous>, transform_indices = @transform_5, window_bounds = array<i64: 128, 128>}, {pipeline_mode = #tpu.pipeline_mode<synchronous>, transform_indices = @transform_6, window_bounds = array<i64: 1, 128>}, {pipeline_mode = #tpu.pipeline_mode<synchronous>, transform_indices = @transform_7, window_bounds = array<i64: 1, 128>}, {transform_indices = @transform_8, window_bounds = array<i64: 16, 128>}]} {
    %c0 = arith.constant 0 : index
    %c0_0 = arith.constant 0 : index
    %0 = vector.load %arg1[%c0, %c0_0] : memref<16x128xf32, #tpu.memory_space<vmem>>, vector<16x128xf32>
    %c0_1 = arith.constant 0 : index
    %c0_2 = arith.constant 0 : index
    %1 = vector.load %arg2[%c0_1, %c0_2] : memref<16x128xf32, #tpu.memory_space<vmem>>, vector<16x128xf32>
    %2 = arith.truncf %1 : vector<16x128xf32> to vector<16x128xbf16>
    %c0_3 = arith.constant 0 : index
    %c0_4 = arith.constant 0 : index
    %3 = vector.load %arg4[%c0_3, %c0_4] : memref<1x256xf32, #tpu.memory_space<vmem>>, vector<1x256xf32>
    %c0_5 = arith.constant 0 : index
    %c0_6 = arith.constant 0 : index
    %4 = vector.load %arg7[%c0_5, %c0_6] : memref<1x128xf32, #tpu.memory_space<vmem>>, vector<1x128xf32>
    %c0_7 = arith.constant 0 : index
    %c0_8 = arith.constant 0 : index
    %5 = vector.load %arg8[%c0_7, %c0_8] : memref<1x128xf32, #tpu.memory_space<vmem>>, vector<1x128xf32>
    %c0_9 = arith.constant 0 : index
    %c0_10 = arith.constant 0 : index
    %6 = vector.load %arg3[%c0_9, %c0_10] : memref<128x256xbf16, #tpu.memory_space<vmem>>, vector<128x256xbf16>
    %cst = arith.constant dense<0.000000e+00> : vector<16x256xf32>
    %7 = tpu.matmul %2, %6, %cst {dimension_numbers = #tpu.dot_dimension_numbers<[1], [0], [0], [1], [0, 0, 1, 1], [], []>} : vector<16x128xbf16>, vector<128x256xbf16>, vector<16x256xf32> -> vector<16x256xf32>
    %8 = vector.broadcast %3 : vector<1x256xf32> to vector<16x256xf32>
    %9 = arith.addf %7, %8 : vector<16x256xf32>
    %cst_11 = arith.constant 0.000000e+00 : f32
    %10 = vector.broadcast %cst_11 : f32 to vector<16x256xf32>
    %11 = arith.maximumf %9, %10 : vector<16x256xf32>
    %12 = arith.truncf %11 : vector<16x256xf32> to vector<16x256xbf16>
    %13 = vector.extract_strided_slice %12 {offsets = [0, 0], sizes = [16, 128], strides = [1, 1]} : vector<16x256xbf16> to vector<16x128xbf16>
    %c0_12 = arith.constant 0 : index
    %c0_13 = arith.constant 0 : index
    %14 = vector.load %arg5[%c0_12, %c0_13] : memref<128x128xbf16, #tpu.memory_space<vmem>>, vector<128x128xbf16>
    %cst_14 = arith.constant dense<0.000000e+00> : vector<16x128xf32>
    %15 = tpu.matmul %13, %14, %cst_14 {dimension_numbers = #tpu.dot_dimension_numbers<[1], [0], [0], [1], [0, 0, 1, 1], [], []>} : vector<16x128xbf16>, vector<128x128xbf16>, vector<16x128xf32> -> vector<16x128xf32>
    %16 = vector.extract_strided_slice %12 {offsets = [0, 128], sizes = [16, 128], strides = [1, 1]} : vector<16x256xbf16> to vector<16x128xbf16>
    %c0_15 = arith.constant 0 : index
    %c0_16 = arith.constant 0 : index
    %17 = vector.load %arg6[%c0_15, %c0_16] : memref<128x128xbf16, #tpu.memory_space<vmem>>, vector<128x128xbf16>
    %cst_17 = arith.constant dense<0.000000e+00> : vector<16x128xf32>
    %18 = tpu.matmul %16, %17, %cst_17 {dimension_numbers = #tpu.dot_dimension_numbers<[1], [0], [0], [1], [0, 0, 1, 1], [], []>} : vector<16x128xbf16>, vector<128x128xbf16>, vector<16x128xf32> -> vector<16x128xf32>
    %cst_18 = arith.constant dense<0.000000e+00> : vector<16xf32>
    %19 = vector.multi_reduction <add>, %0, %cst_18 [1] : vector<16x128xf32> to vector<16xf32>
    %20 = vector.shape_cast %19 : vector<16xf32> to vector<16x1xf32>
    %cst_19 = arith.constant 3.125000e-02 : f32
    %21 = vector.broadcast %cst_19 : f32 to vector<16x1xf32>
    %22 = arith.mulf %20, %21 : vector<16x1xf32>
    %23 = vector.broadcast %22 : vector<16x1xf32> to vector<16x128xf32>
    %24 = arith.subf %0, %23 : vector<16x128xf32>
    %25 = arith.mulf %24, %24 : vector<16x128xf32>
    %cst_20 = arith.constant dense<0.000000e+00> : vector<16xf32>
    %26 = vector.multi_reduction <add>, %25, %cst_20 [1] : vector<16x128xf32> to vector<16xf32>
    %27 = vector.shape_cast %26 : vector<16xf32> to vector<16x1xf32>
    %28 = arith.mulf %22, %22 : vector<16x1xf32>
    %cst_21 = arith.constant 9.600000e+01 : f32
    %29 = vector.broadcast %cst_21 : f32 to vector<16x1xf32>
    %30 = arith.mulf %29, %28 : vector<16x1xf32>
    %31 = arith.subf %27, %30 : vector<16x1xf32>
    %cst_22 = arith.constant 0.0322580636 : f32
    %32 = vector.broadcast %cst_22 : f32 to vector<16x1xf32>
    %33 = arith.mulf %31, %32 : vector<16x1xf32>
    %cst_23 = arith.constant 0.000000e+00 : f32
    %34 = vector.broadcast %cst_23 : f32 to vector<16x1xf32>
    %35 = arith.maximumf %33, %34 : vector<16x1xf32>
    %36 = math.sqrt %35 : vector<16x1xf32>
    %cst_24 = arith.constant 9.99999997E-7 : f32
    %37 = vector.broadcast %cst_24 : f32 to vector<16x1xf32>
    %38 = arith.addf %36, %37 : vector<16x1xf32>
    %39 = tpu.reciprocal %38 {approx = true} : vector<16x1xf32> -> vector<16x1xf32>
    %40 = arith.mulf %38, %39 : vector<16x1xf32>
    %cst_25 = arith.constant 2.000000e+00 : f32
    %41 = vector.broadcast %cst_25 : f32 to vector<16x1xf32>
    %42 = arith.subf %41, %40 : vector<16x1xf32>
    %43 = arith.mulf %39, %42 : vector<16x1xf32>
    %44 = vector.broadcast %4 : vector<1x128xf32> to vector<16x128xf32>
    %45 = arith.addf %44, %15 : vector<16x128xf32>
    %46 = vector.broadcast %43 : vector<16x1xf32> to vector<16x128xf32>
    %47 = arith.mulf %24, %46 : vector<16x128xf32>
    %48 = arith.mulf %45, %47 : vector<16x128xf32>
    %49 = vector.broadcast %5 : vector<1x128xf32> to vector<16x128xf32>
    %50 = arith.addf %49, %18 : vector<16x128xf32>
    %51 = arith.addf %48, %50 : vector<16x128xf32>
    %c0_26 = arith.constant 0 : index
    %c0_27 = arith.constant 0 : index
    %52 = vector.load %arg9[%c0_26, %c0_27] : memref<16x128xf32, #tpu.memory_space<vmem>>, vector<16x128xf32>
    tpu.vector_store %arg9[%c0_26, %c0_27], %51 {strides = array<i32>} : memref<16x128xf32, #tpu.memory_space<vmem>>, vector<16x128xf32>,
    return
  }
  func.func @transform_0(%arg0: i32) -> (i32, i32) {
    %c0_i32 = arith.constant 0 : i32
    %c0_i32_0 = arith.constant 0 : i32
    return %arg0, %c0_i32 : i32, i32
  }
  func.func @transform_1(%arg0: i32) -> (i32, i32) {
    %c0_i32 = arith.constant 0 : i32
    %c0_i32_0 = arith.constant 0 : i32
    return %arg0, %c0_i32 : i32, i32
  }
  func.func @transform_2(%arg0: i32) -> (i32, i32) {
    %c0_i32 = arith.constant 0 : i32
    %c0_i32_0 = arith.constant 0 : i32
    %c0_i32_1 = arith.constant 0 : i32
    return %c0_i32, %c0_i32_0 : i32, i32
  }
  func.func @transform_3(%arg0: i32) -> (i32, i32) {
    %c0_i32 = arith.constant 0 : i32
    %c0_i32_0 = arith.constant 0 : i32
    %c0_i32_1 = arith.constant 0 : i32
    return %c0_i32, %c0_i32_0 : i32, i32
  }
  func.func @transform_4(%arg0: i32) -> (i32, i32) {
    %c0_i32 = arith.constant 0 : i32
    %c0_i32_0 = arith.constant 0 : i32
    %c0_i32_1 = arith.constant 0 : i32
    return %c0_i32, %c0_i32_0 : i32, i32
  }
  func.func @transform_5(%arg0: i32) -> (i32, i32) {
    %c0_i32 = arith.constant 0 : i32
    %c0_i32_0 = arith.constant 0 : i32
    %c0_i32_1 = arith.constant 0 : i32
    return %c0_i32, %c0_i32_0 : i32, i32
  }
  func.func @transform_6(%arg0: i32) -> (i32, i32) {
    %c0_i32 = arith.constant 0 : i32
    %c0_i32_0 = arith.constant 0 : i32
    %c0_i32_1 = arith.constant 0 : i32
    return %c0_i32, %c0_i32_0 : i32, i32
  }
  func.func @transform_7(%arg0: i32) -> (i32, i32) {
    %c0_i32 = arith.constant 0 : i32
    %c0_i32_0 = arith.constant 0 : i32
    %c0_i32_1 = arith.constant 0 : i32
    return %c0_i32, %c0_i32_0 : i32, i32
  }
  func.func @transform_8(%arg0: i32) -> (i32, i32) {
    %c0_i32 = arith.constant 0 : i32
    %c0_i32_0 = arith.constant 0 : i32
    return %arg0, %c0_i32 : i32, i32
  }
}

module attributes {stable_mosaic.version = 11 : i64} {
  func.func @_cln_kernel(%arg0: i32, %arg1: memref<16x128xf32, #tpu.memory_space<vmem>>, %arg2: memref<16x128xf32, #tpu.memory_space<vmem>>, %arg3: memref<128x256xbf16, #tpu.memory_space<vmem>>, %arg4: memref<1x256xf32, #tpu.memory_space<vmem>>, %arg5: memref<128x128xbf16, #tpu.memory_space<vmem>>, %arg6: memref<128x128xbf16, #tpu.memory_space<vmem>>, %arg7: memref<1x128xf32, #tpu.memory_space<vmem>>, %arg8: memref<1x128xf32, #tpu.memory_space<vmem>>, %arg9: memref<16x128xf32, #tpu.memory_space<vmem>>) attributes {dimension_semantics = [#tpu.dimension_semantics<parallel>], iteration_bounds = array<i64: 1>, scalar_prefetch = 0 : i64, scratch_operands = 0 : i64, tpu.core_type = #tpu.core_type<tc>, window_params = [{transform_indices = @transform_0, window_bounds = array<i64: 16, 128>}, {transform_indices = @transform_1, window_bounds = array<i64: 16, 128>}, {pipeline_mode = #tpu.pipeline_mode<synchronous>, transform_indices = @transform_2, window_bounds = array<i64: 128, 256>}, {pipeline_mode = #tpu.pipeline_mode<synchronous>, transform_indices = @transform_3, window_bounds = array<i64: 1, 256>}, {pipeline_mode = #tpu.pipeline_mode<synchronous>, transform_indices = @transform_4, window_bounds = array<i64: 128, 128>}, {pipeline_mode = #tpu.pipeline_mode<synchronous>, transform_indices = @transform_5, window_bounds = array<i64: 128, 128>}, {pipeline_mode = #tpu.pipeline_mode<synchronous>, transform_indices = @transform_6, window_bounds = array<i64: 1, 128>}, {pipeline_mode = #tpu.pipeline_mode<synchronous>, transform_indices = @transform_7, window_bounds = array<i64: 1, 128>}, {transform_indices = @transform_8, window_bounds = array<i64: 16, 128>}]} {
    %c0 = arith.constant 0 : index
    %c0_0 = arith.constant 0 : index
    %0 = vector.load %arg1[%c0, %c0_0] : memref<16x128xf32, #tpu.memory_space<vmem>>, vector<16x128xf32>
    %c0_1 = arith.constant 0 : index
    %c0_2 = arith.constant 0 : index
    %1 = vector.load %arg2[%c0_1, %c0_2] : memref<16x128xf32, #tpu.memory_space<vmem>>, vector<16x128xf32>
    %2 = arith.truncf %1 : vector<16x128xf32> to vector<16x128xbf16>
    %c0_3 = arith.constant 0 : index
    %c0_4 = arith.constant 0 : index
    %3 = vector.load %arg4[%c0_3, %c0_4] : memref<1x256xf32, #tpu.memory_space<vmem>>, vector<1x256xf32>
    %c0_5 = arith.constant 0 : index
    %c0_6 = arith.constant 0 : index
    %4 = vector.load %arg7[%c0_5, %c0_6] : memref<1x128xf32, #tpu.memory_space<vmem>>, vector<1x128xf32>
    %c0_7 = arith.constant 0 : index
    %c0_8 = arith.constant 0 : index
    %5 = vector.load %arg8[%c0_7, %c0_8] : memref<1x128xf32, #tpu.memory_space<vmem>>, vector<1x128xf32>
    %c0_9 = arith.constant 0 : index
    %c0_10 = arith.constant 0 : index
    %6 = vector.load %arg3[%c0_9, %c0_10] : memref<128x256xbf16, #tpu.memory_space<vmem>>, vector<128x256xbf16>
    %cst = arith.constant dense<0.000000e+00> : vector<16x256xf32>
    %7 = tpu.matmul %2, %6, %cst {dimension_numbers = #tpu.dot_dimension_numbers<[1], [0], [0], [1], [0, 0, 1, 1], [], []>} : vector<16x128xbf16>, vector<128x256xbf16>, vector<16x256xf32> -> vector<16x256xf32>
    %8 = vector.broadcast %3 : vector<1x256xf32> to vector<16x256xf32>
    %9 = arith.addf %7, %8 : vector<16x256xf32>
    %cst_11 = arith.constant 0.000000e+00 : f32
    %10 = vector.broadcast %cst_11 : f32 to vector<16x256xf32>
    %11 = arith.maximumf %9, %10 : vector<16x256xf32>
    %12 = arith.truncf %11 : vector<16x256xf32> to vector<16x256xbf16>
    %13 = vector.extract_strided_slice %12 {offsets = [0, 0], sizes = [16, 128], strides = [1, 1]} : vector<16x256xbf16> to vector<16x128xbf16>
    %c0_12 = arith.constant 0 : index
    %c0_13 = arith.constant 0 : index
    %14 = vector.load %arg5[%c0_12, %c0_13] : memref<128x128xbf16, #tpu.memory_space<vmem>>, vector<128x128xbf16>
    %cst_14 = arith.constant dense<0.000000e+00> : vector<16x128xf32>
    %15 = tpu.matmul %13, %14, %cst_14 {dimension_numbers = #tpu.dot_dimension_numbers<[1], [0], [0], [1], [0, 0, 1, 1], [], []>} : vector<16x128xbf16>, vector<128x128xbf16>, vector<16x128xf32> -> vector<16x128xf32>
    %16 = vector.extract_strided_slice %12 {offsets = [0, 128], sizes = [16, 128], strides = [1, 1]} : vector<16x256xbf16> to vector<16x128xbf16>
    %c0_15 = arith.constant 0 : index
    %c0_16 = arith.constant 0 : index
    %17 = vector.load %arg6[%c0_15, %c0_16] : memref<128x128xbf16, #tpu.memory_space<vmem>>, vector<128x128xbf16>
    %cst_17 = arith.constant dense<0.000000e+00> : vector<16x128xf32>
    %18 = tpu.matmul %16, %17, %cst_17 {dimension_numbers = #tpu.dot_dimension_numbers<[1], [0], [0], [1], [0, 0, 1, 1], [], []>} : vector<16x128xbf16>, vector<128x128xbf16>, vector<16x128xf32> -> vector<16x128xf32>
    %cst_18 = arith.constant dense<0.000000e+00> : vector<16xf32>
    %19 = vector.multi_reduction <add>, %0, %cst_18 [1] : vector<16x128xf32> to vector<16xf32>
    %20 = vector.shape_cast %19 : vector<16xf32> to vector<16x1xf32>
    %cst_19 = arith.constant 3.125000e-02 : f32
    %21 = vector.broadcast %cst_19 : f32 to vector<16x1xf32>
    %22 = arith.mulf %20, %21 : vector<16x1xf32>
    %23 = vector.broadcast %22 : vector<16x1xf32> to vector<16x128xf32>
    %24 = arith.subf %0, %23 : vector<16x128xf32>
    %25 = arith.mulf %24, %24 : vector<16x128xf32>
    %cst_20 = arith.constant dense<0.000000e+00> : vector<16xf32>
    %26 = vector.multi_reduction <add>, %25, %cst_20 [1] : vector<16x128xf32> to vector<16xf32>
    %27 = vector.shape_cast %26 : vector<16xf32> to vector<16x1xf32>
    %28 = arith.mulf %22, %22 : vector<16x1xf32>
    %cst_21 = arith.constant 9.600000e+01 : f32
    %29 = vector.broadcast %cst_21 : f32 to vector<16x1xf32>
    %30 = arith.mulf %29, %28 : vector<16x1xf32>
    %31 = arith.subf %27, %30 : vector<16x1xf32>
    %cst_22 = arith.constant 0.0322580636 : f32
    %32 = vector.broadcast %cst_22 : f32 to vector<16x1xf32>
    %33 = arith.mulf %31, %32 : vector<16x1xf32>
    %cst_23 = arith.constant 0.000000e+00 : f32
    %34 = vector.broadcast %cst_23 : f32 to vector<16x1xf32>
    %35 = arith.maximumf %33, %34 : vector<16x1xf32>
    %36 = math.sqrt %35 : vector<16x1xf32>
    %cst_24 = arith.constant 9.99999997E-7 : f32
    %37 = vector.broadcast %cst_24 : f32 to vector<16x1xf32>
    %38 = arith.addf %36, %37 : vector<16x1xf32>
    %39 = tpu.reciprocal %38 {approx = true} : vector<16x1xf32> -> vector<16x1xf32>
    %40 = arith.mulf %38, %39 : vector<16x1xf32>
    %cst_25 = arith.constant 2.000000e+00 : f32
    %41 = vector.broadcast %cst_25 : f32 to vector<16x1xf32>
    %42 = arith.subf %41, %40 : vector<16x1xf32>
    %43 = arith.mulf %39, %42 : vector<16x1xf32>
    %44 = vector.broadcast %4 : vector<1x128xf32> to vector<16x128xf32>
    %45 = arith.addf %44, %15 : vector<16x128xf32>
    %46 = vector.broadcast %43 : vector<16x1xf32> to vector<16x128xf32>
    %47 = arith.mulf %24, %46 : vector<16x128xf32>
    %48 = arith.mulf %45, %47 : vector<16x128xf32>
    %49 = vector.broadcast %5 : vector<1x128xf32> to vector<16x128xf32>
    %50 = arith.addf %49, %18 : vector<16x128xf32>
    %51 = arith.addf %48, %50 : vector<16x128xf32>
    %c0_26 = arith.constant 0 : index
    %c0_27 = arith.constant 0 : index
    %52 = vector.load %arg9[%c0_26, %c0_27] : memref<16x128xf32, #tpu.memory_space<vmem>>, vector<16x128xf32>
    tpu.vector_store %arg9[%c0_26, %c0_27], %51 {strides = array<i32>} : memref<16x128xf32, #tpu.memory_space<vmem>>, vector<16x128xf32>,
    return
  }
  func.func @transform_0(%arg0: i32) -> (i32, i32) {
    %c0_i32 = arith.constant 0 : i32
    %c0_i32_0 = arith.constant 0 : i32
    return %arg0, %c0_i32 : i32, i32
  }
  func.func @transform_1(%arg0: i32) -> (i32, i32) {
    %c0_i32 = arith.constant 0 : i32
    %c0_i32_0 = arith.constant 0 : i32
    return %arg0, %c0_i32 : i32, i32
  }
  func.func @transform_2(%arg0: i32) -> (i32, i32) {
    %c0_i32 = arith.constant 0 : i32
    %c0_i32_0 = arith.constant 0 : i32
    %c0_i32_1 = arith.constant 0 : i32
    return %c0_i32, %c0_i32_0 : i32, i32
  }
  func.func @transform_3(%arg0: i32) -> (i32, i32) {
    %c0_i32 = arith.constant 0 : i32
    %c0_i32_0 = arith.constant 0 : i32
    %c0_i32_1 = arith.constant 0 : i32
    return %c0_i32, %c0_i32_0 : i32, i32
  }
  func.func @transform_4(%arg0: i32) -> (i32, i32) {
    %c0_i32 = arith.constant 0 : i32
    %c0_i32_0 = arith.constant 0 : i32
    %c0_i32_1 = arith.constant 0 : i32
    return %c0_i32, %c0_i32_0 : i32, i32
  }
  func.func @transform_5(%arg0: i32) -> (i32, i32) {
    %c0_i32 = arith.constant 0 : i32
    %c0_i32_0 = arith.constant 0 : i32
    %c0_i32_1 = arith.constant 0 : i32
    return %c0_i32, %c0_i32_0 : i32, i32
  }
  func.func @transform_6(%arg0: i32) -> (i32, i32) {
    %c0_i32 = arith.constant 0 : i32
    %c0_i32_0 = arith.constant 0 : i32
    %c0_i32_1 = arith.constant 0 : i32
    return %c0_i32, %c0_i32_0 : i32, i32
  }
  func.func @transform_7(%arg0: i32) -> (i32, i32) {
    %c0_i32 = arith.constant 0 : i32
    %c0_i32_0 = arith.constant 0 : i32
    %c0_i32_1 = arith.constant 0 : i32
    return %c0_i32, %c0_i32_0 : i32, i32
  }
  func.func @transform_8(%arg0: i32) -> (i32, i32) {
    %c0_i32 = arith.constant 0 : i32
    %c0_i32_0 = arith.constant 0 : i32
    return %arg0, %c0_i32 : i32, i32
  }
}

</mosaic_0001>

<llo_original>
// kernel: tpu_custom_call.1
$region0: #{tpu_custom_call.1}
  #allocation0 [shape = 'u32[]', space=smem, size = 0x4, offset = 0x4, fixed_abs, tag = 'smem constant byte address 0x4 - core index']
  #allocation1 [shape = 'u32[144,128]{1,0:T(1,128)}', space=vmem, size = 0x12000, scoped, tag = 'internal scratch']
  %s0 = inlined_call_operand.hbm [shape: f32[16,128], index: 0, kind: input, shape index: {}]
  %s1 = inlined_call_operand.hbm [shape: f32[16,128], index: 1, kind: input, shape index: {}]
  %s2 = inlined_call_operand.hbm [shape: bf16[128,256], index: 2, kind: input, shape index: {}]
  %s3 = inlined_call_operand.vmem [shape: f32[1,256], index: 3, kind: input, shape index: {}]
  %s4 = inlined_call_operand.hbm [shape: bf16[128,128], index: 4, kind: input, shape index: {}]
  %s5 = inlined_call_operand.hbm [shape: bf16[128,128], index: 5, kind: input, shape index: {}]
  %s6 = inlined_call_operand.vmem [shape: f32[1,128], index: 6, kind: input, shape index: {}]
  %s7 = inlined_call_operand.vmem [shape: f32[1,128], index: 7, kind: input, shape index: {}]
  %s8 = inlined_call_operand.hbm [shape: f32[16,128], index: 8, kind: output, shape index: {}]
  %s9 = sld [smem:[#allocation0]]
  $region62: #{tpu_custom_call.1} parent=0
    _
  %s11 = ssub.s32 1, %s9
  %s12 = scalar_select 0, %s11, %s9
  $region1: #{tpu_custom_call.1} parent=0
    #allocation2 [shape = 'u8[8192]{0}', space=vmem, size = 0x2000, scoped, tag = 'input window, operand 0, single buffered']
    #allocation3 [shape = 's32[1]{0}', space=sflag, size = 0x4, scoped, tag = 'scoped memory for tpu_custom_call.1']
    #allocation4 [shape = 's32[1]{0}', space=sflag, size = 0x4, scoped, tag = 'scoped memory for tpu_custom_call.1']
    #allocation5 [shape = 'u8[8192]{0}', space=vmem, size = 0x2000, scoped, tag = 'input window, operand 1, single buffered']
    #allocation6 [shape = 's32[1]{0}', space=sflag, size = 0x4, scoped, tag = 'scoped memory for tpu_custom_call.1']
    #allocation7 [shape = 'u8[65536]{0}', space=vmem, size = 0x10000, scoped, tag = 'input window, operand 2, single buffered']
    #allocation8 [shape = 'u8[32768]{0}', space=vmem, size = 0x8000, scoped, tag = 'input window, operand 4, single buffered']
    #allocation9 [shape = 's32[1]{0}', space=sflag, size = 0x4, scoped, tag = 'scoped memory for tpu_custom_call.1']
    #allocation10 [shape = 'u8[32768]{0}', space=vmem, size = 0x8000, scoped, tag = 'input window, operand 5, single buffered']
    #allocation11 [shape = 'u8[8192]{0}', space=vmem, size = 0x2000, scoped, tag = 'output window, operand 0, single buffered']
    %13 = vsyncpa [#allocation3], 0
    %14 = vsyncpa [#allocation6], 0
    %15 = vsyncpa [#allocation9], 0
    %16 = vsyncpa [#allocation4], 0
    // Predicated region
    $region2: #{tpu_custom_call.1} parent=1 // pred_check
      _
    $region3: #{tpu_custom_call.1} parent=1 // pred_check_branch
      %18 = sbr.rel (0) target = $region5
    $region4: #{tpu_custom_call.1} parent=1 // pred_region
      %s20 = ssub.s32 256, 256
      %21 = vsyncadd [#allocation3], %s20
      %s22 = sshll.u32 [#allocation2], 4
      %s23 = int_to_ptr.vmem [resolvable:$true] %s22
      %28 = dma.hbm_to_vmem [thread:$0]  %s0, 256, %s23, [#allocation3], 128, 128, 8
    $region5: #{tpu_custom_call.1} parent=1 // pred_fallthru
      _
    // Predicated region
    $region6: #{tpu_custom_call.1} parent=1 // pred_check
      _
    $region7: #{tpu_custom_call.1} parent=1 // pred_check_branch
      %30 = sbr.rel (0) target = $region9
    $region8: #{tpu_custom_call.1} parent=1 // pred_region
      %s32 = ssub.s32 256, 256
      %33 = vsyncadd [#allocation6], %s32
      %s34 = sshll.u32 [#allocation5], 4
      %s35 = int_to_ptr.vmem [resolvable:$true] %s34
      %40 = dma.hbm_to_vmem [thread:$0]  %s1, 256, %s35, [#allocation6], 128, 128, 8
    $region9: #{tpu_custom_call.1} parent=1 // pred_fallthru
      _
    // Predicated region
    $region10: #{tpu_custom_call.1} parent=1 // pred_check
      _
    $region11: #{tpu_custom_call.1} parent=1 // pred_check_branch
      %42 = sbr.rel (0) target = $region13
    $region12: #{tpu_custom_call.1} parent=1 // pred_region
      %s44 = ssub.s32 2048, 2048
      %45 = vsyncadd [#allocation6], %s44
      %s46 = sshll.u32 [#allocation7], 4
      %s47 = int_to_ptr.vmem [resolvable:$true] %s46
      %52 = dma.hbm_to_vmem [thread:$0]  %s2, 2048, %s47, [#allocation6], 128, 128, 8
    $region13: #{tpu_custom_call.1} parent=1 // pred_fallthru
      _
    // Predicated region
    $region14: #{tpu_custom_call.1} parent=1 // pred_check
      _
    $region15: #{tpu_custom_call.1} parent=1 // pred_check_branch
      %54 = sbr.rel (0) target = $region17
    $region16: #{tpu_custom_call.1} parent=1 // pred_region
      _
    $region17: #{tpu_custom_call.1} parent=1 // pred_fallthru
      _
    // Predicated region
    $region18: #{tpu_custom_call.1} parent=1 // pred_check
      _
    $region19: #{tpu_custom_call.1} parent=1 // pred_check_branch
      %56 = sbr.rel (0) target = $region21
    $region20: #{tpu_custom_call.1} parent=1 // pred_region
      %s58 = ssub.s32 1024, 1024
      %59 = vsyncadd [#allocation9], %s58
      %s60 = sshll.u32 [#allocation8], 4
      %s61 = int_to_ptr.vmem [resolvable:$true] %s60
      %66 = dma.hbm_to_vmem [thread:$0]  %s4, 1024, %s61, [#allocation9], 64, 64, 4
    $region21: #{tpu_custom_call.1} parent=1 // pred_fallthru
      _
    // Predicated region
    $region22: #{tpu_custom_call.1} parent=1 // pred_check
      _
    $region23: #{tpu_custom_call.1} parent=1 // pred_check_branch
      %68 = sbr.rel (0) target = $region25
    $region24: #{tpu_custom_call.1} parent=1 // pred_region
      %s70 = ssub.s32 1024, 1024
      %71 = vsyncadd [#allocation9], %s70
      %s72 = sshll.u32 [#allocation10], 4
      %s73 = int_to_ptr.vmem [resolvable:$true] %s72
      %78 = dma.hbm_to_vmem [thread:$0]  %s5, 1024, %s73, [#allocation9], 64, 64, 4
    $region25: #{tpu_custom_call.1} parent=1 // pred_fallthru
      _
    // Predicated region
    $region26: #{tpu_custom_call.1} parent=1 // pred_check
      _
    $region27: #{tpu_custom_call.1} parent=1 // pred_check_branch
      %80 = sbr.rel (0) target = $region29
    $region28: #{tpu_custom_call.1} parent=1 // pred_region
      _
    $region29: #{tpu_custom_call.1} parent=1 // pred_fallthru
      _
    // Predicated region
    $region30: #{tpu_custom_call.1} parent=1 // pred_check
      _
    $region31: #{tpu_custom_call.1} parent=1 // pred_check_branch
      %82 = sbr.rel (0) target = $region33
    $region32: #{tpu_custom_call.1} parent=1 // pred_region
      _
    $region33: #{tpu_custom_call.1} parent=1 // pred_fallthru
      _
    // Predicated region
    $region34: #{tpu_custom_call.1} parent=1 // pred_check
      _
    $region35: #{tpu_custom_call.1} parent=1 // pred_check_branch
      %84 = sbr.rel (0) target = $region37
    $region36: #{tpu_custom_call.1} parent=1 // pred_region
      %85 = dma.done [#allocation3], 256
    $region37: #{tpu_custom_call.1} parent=1 // pred_fallthru
      _
    // Predicated region
    $region38: #{tpu_custom_call.1} parent=1 // pred_check
      _
    $region39: #{tpu_custom_call.1} parent=1 // pred_check_branch
      %87 = sbr.rel (0) target = $region41
    $region40: #{tpu_custom_call.1} parent=1 // pred_region
      %88 = dma.done [#allocation6], 256
    $region41: #{tpu_custom_call.1} parent=1 // pred_fallthru
      _
    // Predicated region
    $region42: #{tpu_custom_call.1} parent=1 // pred_check
      _
    $region43: #{tpu_custom_call.1} parent=1 // pred_check_branch
      %90 = sbr.rel (0) target = $region45
    $region44: #{tpu_custom_call.1} parent=1 // pred_region
      %91 = dma.done [#allocation6], 2048
    $region45: #{tpu_custom_call.1} parent=1 // pred_fallthru
      _
    // Predicated region
    $region46: #{tpu_custom_call.1} parent=1 // pred_check
      _
    $region47: #{tpu_custom_call.1} parent=1 // pred_check_branch
      %93 = sbr.rel (0) target = $region49
    $region48: #{tpu_custom_call.1} parent=1 // pred_region
      %94 = dma.done [#allocation9], 1024
    $region49: #{tpu_custom_call.1} parent=1 // pred_fallthru
      _
    // Predicated region
    $region50: #{tpu_custom_call.1} parent=1 // pred_check
      _
    $region51: #{tpu_custom_call.1} parent=1 // pred_check_branch
      %96 = sbr.rel (0) target = $region53
    $region52: #{tpu_custom_call.1} parent=1 // pred_region
      %97 = dma.done [#allocation9], 1024
    $region53: #{tpu_custom_call.1} parent=1 // pred_fallthru
      _
    %v99 = vld [vmem:[#allocation2] sm:$0xff]
    %v100 = vld [vmem:[#allocation2 + $0x8] sm:$0xff]
    %v101 = vld [vmem:[#allocation5] sm:$0xff]
    %v102 = vld [vmem:[#allocation5 + $0x8] sm:$0xff]
    %v103 = vpack.c.bf16 %v102, %v101
    %v104 = vld [vmem:[%s3] sm:$0x3]
    %v105 = vld [vmem:[%s6] sm:$0x1]
    %v106 = vld [vmem:[%s7] sm:$0x1]
    %v107 = vld [vmem:[#allocation7] sm:$0xff]
    %v108 = vld [vmem:[#allocation7 + $0x8] sm:$0xff]
    %v109 = vld [vmem:[#allocation7 + $0x10] sm:$0xff]
    %v110 = vld [vmem:[#allocation7 + $0x18] sm:$0xff]
    %v111 = vld [vmem:[#allocation7 + $0x20] sm:$0xff]
    %v112 = vld [vmem:[#allocation7 + $0x28] sm:$0xff]
    %v113 = vld [vmem:[#allocation7 + $0x30] sm:$0xff]
    %v114 = vld [vmem:[#allocation7 + $0x38] sm:$0xff]
    %v115 = vld [vmem:[#allocation7 + $0x40] sm:$0xff]
    %v116 = vld [vmem:[#allocation7 + $0x48] sm:$0xff]
    %v117 = vld [vmem:[#allocation7 + $0x50] sm:$0xff]
    %v118 = vld [vmem:[#allocation7 + $0x58] sm:$0xff]
    %v119 = vld [vmem:[#allocation7 + $0x60] sm:$0xff]
    %v120 = vld [vmem:[#allocation7 + $0x68] sm:$0xff]
    %v121 = vld [vmem:[#allocation7 + $0x70] sm:$0xff]
    %v122 = vld [vmem:[#allocation7 + $0x78] sm:$0xff]
    %v124 = vlaneseq
    %v125 = vshrl.u32 %v124, 7
    %v126 = vsub.s32 0, %v125
    %v127 = vrot.slane %v104, %v126
    %v128 = vlaneseq
    %v129 = vshrl.u32 %v128, 7
    %v130 = vsub.s32 1, %v129
    %v131 = vrot.slane %v104, %v130
    %v150 = vunpack.c.l.b16 %v107
    %v151 = vunpack.c.h.b16 %v107
    %v152 = vunpack.c.l.b16 %v108
    %v153 = vunpack.c.h.b16 %v108
    %v154 = vunpack.c.l.b16 %v109
    %v155 = vunpack.c.h.b16 %v109
    %v156 = vunpack.c.l.b16 %v110
    %v157 = vunpack.c.h.b16 %v110
    %v158 = vunpack.c.l.b16 %v111
    %v159 = vunpack.c.h.b16 %v111
    %v160 = vunpack.c.l.b16 %v112
    %v161 = vunpack.c.h.b16 %v112
    %v162 = vunpack.c.l.b16 %v113
    %v163 = vunpack.c.h.b16 %v113
    %v164 = vunpack.c.l.b16 %v114
    %v165 = vunpack.c.h.b16 %v114
    %v166 = vunpack.c.l.b16 %v115
    %v167 = vunpack.c.h.b16 %v115
    %v168 = vunpack.c.l.b16 %v116
    %v169 = vunpack.c.h.b16 %v116
    %v170 = vunpack.c.l.b16 %v117
    %v171 = vunpack.c.h.b16 %v117
    %v172 = vunpack.c.l.b16 %v118
    %v173 = vunpack.c.h.b16 %v118
    %v174 = vunpack.c.l.b16 %v119
    %v175 = vunpack.c.h.b16 %v119
    %v176 = vunpack.c.l.b16 %v120
    %v177 = vunpack.c.h.b16 %v120
    %v178 = vunpack.c.l.b16 %v121
    %v179 = vunpack.c.h.b16 %v121
    %v180 = vunpack.c.l.b16 %v122
    %v181 = vunpack.c.h.b16 %v122
    %v182 = vpack.c.b16 %v152, %v150
    %v183 = vpack.c.b16 %v153, %v151
    %v184 = vpack.c.b16 %v156, %v154
    %v185 = vpack.c.b16 %v157, %v155
    %v186 = vpack.c.b16 %v160, %v158
    %v187 = vpack.c.b16 %v161, %v159
    %v188 = vpack.c.b16 %v164, %v162
    %v189 = vpack.c.b16 %v165, %v163
    %v190 = vpack.c.b16 %v168, %v166
    %v191 = vpack.c.b16 %v169, %v167
    %v192 = vpack.c.b16 %v172, %v170
    %v193 = vpack.c.b16 %v173, %v171
    %v194 = vpack.c.b16 %v176, %v174
    %v195 = vpack.c.b16 %v177, %v175
    %v196 = vpack.c.b16 %v180, %v178
    %v197 = vpack.c.b16 %v181, %v179
    %214 = vmatprep.subr.bf16.mxu0 %v197
    %215 = vmatpush1.bf16.msra.mxu0 %v196
    %216 = vmatprep.subr.bf16.mxu0 %v195
    %217 = vmatpush1.bf16.msra.mxu0 %v194
    %218 = vmatprep.subr.bf16.mxu0 %v193
    %219 = vmatpush1.bf16.msra.mxu0 %v192
    %220 = vmatprep.subr.bf16.mxu0 %v191
    %221 = vmatpush1.bf16.msra.mxu0 %v190
    %222 = vmatprep.subr.bf16.mxu0 %v189
    %223 = vmatpush1.bf16.msra.mxu0 %v188
    %224 = vmatprep.subr.bf16.mxu0 %v187
    %225 = vmatpush1.bf16.msra.mxu0 %v186
    %226 = vmatprep.subr.bf16.mxu0 %v185
    %227 = vmatpush1.bf16.msra.mxu0 %v184
    %228 = vmatprep.subr.bf16.mxu0 %v183
    %229 = vmatpush1.bf16.msra.mxu0 %v182
    %230 = vmatprep.subr.bf16.mxu0 0
    %231 = vmatpush2.bf16.msra.mxu0 0
    %232 = vmatprep.subr.bf16.mxu0 0
    %233 = vmatpush2.bf16.msra.mxu0 0
    %234 = vmatprep.subr.bf16.mxu0 0
    %235 = vmatpush2.bf16.msra.mxu0 0
    %236 = vmatprep.subr.bf16.mxu0 0
    %237 = vmatpush2.bf16.msra.mxu0 0
    %238 = vmatprep.subr.bf16.mxu0 0
    %239 = vmatpush2.bf16.msra.mxu0 0
    %240 = vmatprep.subr.bf16.mxu0 0
    %241 = vmatpush2.bf16.msra.mxu0 0
    %242 = vmatprep.subr.bf16.mxu0 0
    %243 = vmatpush2.bf16.msra.mxu0 0
    %244 = vmatprep.subr.bf16.mxu0 0
    %245 = vmatpush2.bf16.msra.mxu0 0
    %246 = vmatprep.mubr.bf16.mxu0 0
    %247 = vmatmul.mubr.bf16.gmra.mxu0 %v103
    %v248 = vpop.f32.mrf.mxu0
    %v249 = vadd.f32 %v127, %v248
    %v250 = vpop.f32.mrf.mxu0
    %v251 = vadd.f32 %v131, %v250
    %v252 = vpop.f32.mrf.mxu0
    %v253 = vadd.f32 %v127, %v252
    %v254 = vpop.f32.mrf.mxu0
    %v255 = vadd.f32 %v131, %v254
    %256 = vdwg.mxu0
    %v257 = vmax.f32 %v249, 0.0
    %v258 = vmax.f32 %v251, 0.0
    %v259 = vmax.f32 %v253, 0.0
    %v260 = vmax.f32 %v255, 0.0
    %v261 = vpack.c.bf16 %v259, %v257
    %v262 = vpack.c.bf16 %v260, %v258
    %v263 = vld [vmem:[#allocation8] sm:$0xf]
    %v264 = vld [vmem:[#allocation8 + $0x4] sm:$0xf]
    %v265 = vld [vmem:[#allocation8 + $0x8] sm:$0xf]
    %v266 = vld [vmem:[#allocation8 + $0xc] sm:$0xf]
    %v267 = vld [vmem:[#allocation8 + $0x10] sm:$0xf]
    %v268 = vld [vmem:[#allocation8 + $0x14] sm:$0xf]
    %v269 = vld [vmem:[#allocation8 + $0x18] sm:$0xf]
    %v270 = vld [vmem:[#allocation8 + $0x1c] sm:$0xf]
    %v271 = vld [vmem:[#allocation8 + $0x20] sm:$0xf]
    %v272 = vld [vmem:[#allocation8 + $0x24] sm:$0xf]
    %v273 = vld [vmem:[#allocation8 + $0x28] sm:$0xf]
    %v274 = vld [vmem:[#allocation8 + $0x2c] sm:$0xf]
    %v275 = vld [vmem:[#allocation8 + $0x30] sm:$0xf]
    %v276 = vld [vmem:[#allocation8 + $0x34] sm:$0xf]
    %v277 = vld [vmem:[#allocation8 + $0x38] sm:$0xf]
    %v278 = vld [vmem:[#allocation8 + $0x3c] sm:$0xf]
    %v295 = vunpack.c.l.b16 %v263
    %v296 = vunpack.c.l.b16 %v264
    %v297 = vunpack.c.l.b16 %v265
    %v298 = vunpack.c.l.b16 %v266
    %v299 = vunpack.c.l.b16 %v267
    %v300 = vunpack.c.l.b16 %v268
    %v301 = vunpack.c.l.b16 %v269
    %v302 = vunpack.c.l.b16 %v270
    %v303 = vunpack.c.l.b16 %v271
    %v304 = vunpack.c.l.b16 %v272
    %v305 = vunpack.c.l.b16 %v273
    %v306 = vunpack.c.l.b16 %v274
    %v307 = vunpack.c.l.b16 %v275
    %v308 = vunpack.c.l.b16 %v276
    %v309 = vunpack.c.l.b16 %v277
    %v310 = vunpack.c.l.b16 %v278
    %v311 = vpack.c.b16 %v296, %v295
    %v312 = vpack.c.b16 %v298, %v297
    %v313 = vpack.c.b16 %v300, %v299
    %v314 = vpack.c.b16 %v302, %v301
    %v315 = vpack.c.b16 %v304, %v303
    %v316 = vpack.c.b16 %v306, %v305
    %v317 = vpack.c.b16 %v308, %v307
    %v318 = vpack.c.b16 %v310, %v309
    %327 = vmatprep.subr.bf16.mxu0 0
    %328 = vmatpush1.bf16.msra.mxu0 %v318
    %329 = vmatprep.subr.bf16.mxu0 0
    %330 = vmatpush1.bf16.msra.mxu0 %v317
    %331 = vmatprep.subr.bf16.mxu0 0
    %332 = vmatpush1.bf16.msra.mxu0 %v316
    %333 = vmatprep.subr.bf16.mxu0 0
    %334 = vmatpush1.bf16.msra.mxu0 %v315
    %335 = vmatprep.subr.bf16.mxu0 0
    %336 = vmatpush1.bf16.msra.mxu0 %v314
    %337 = vmatprep.subr.bf16.mxu0 0
    %338 = vmatpush1.bf16.msra.mxu0 %v313
    %339 = vmatprep.subr.bf16.mxu0 0
    %340 = vmatpush1.bf16.msra.mxu0 %v312
    %341 = vmatprep.subr.bf16.mxu0 0
    %342 = vmatpush1.bf16.msra.mxu0 %v311
    %343 = vmatprep.subr.bf16.mxu0 0
    %344 = vmatpush2.bf16.msra.mxu0 0
    %345 = vmatprep.subr.bf16.mxu0 0
    %346 = vmatpush2.bf16.msra.mxu0 0
    %347 = vmatprep.subr.bf16.mxu0 0
    %348 = vmatpush2.bf16.msra.mxu0 0
    %349 = vmatprep.subr.bf16.mxu0 0
    %350 = vmatpush2.bf16.msra.mxu0 0
    %351 = vmatprep.subr.bf16.mxu0 0
    %352 = vmatpush2.bf16.msra.mxu0 0
    %353 = vmatprep.subr.bf16.mxu0 0
    %354 = vmatpush2.bf16.msra.mxu0 0
    %355 = vmatprep.subr.bf16.mxu0 0
    %356 = vmatpush2.bf16.msra.mxu0 0
    %357 = vmatprep.subr.bf16.mxu0 0
    %358 = vmatpush2.bf16.msra.mxu0 0
    %359 = vmatprep.mubr.bf16.mxu0 0
    %360 = vmatmul.mubr.bf16.gmra.mxu0 %v261
    %v361 = vpop.f32.mrf.mxu0
    %v362 = vadd.f32 0.0, %v361
    %v363 = vpop.f32.mrf.mxu0
    %v364 = vpop.f32.mrf.mxu0
    %v365 = vadd.f32 0.0, %v364
    %v366 = vpop.f32.mrf.mxu0
    %367 = vdwg.mxu0
    %v368 = vld [vmem:[#allocation10] sm:$0xf]
    %v369 = vld [vmem:[#allocation10 + $0x4] sm:$0xf]
    %v370 = vld [vmem:[#allocation10 + $0x8] sm:$0xf]
    %v371 = vld [vmem:[#allocation10 + $0xc] sm:$0xf]
    %v372 = vld [vmem:[#allocation10 + $0x10] sm:$0xf]
    %v373 = vld [vmem:[#allocation10 + $0x14] sm:$0xf]
    %v374 = vld [vmem:[#allocation10 + $0x18] sm:$0xf]
    %v375 = vld [vmem:[#allocation10 + $0x1c] sm:$0xf]
    %v376 = vld [vmem:[#allocation10 + $0x20] sm:$0xf]
    %v377 = vld [vmem:[#allocation10 + $0x24] sm:$0xf]
    %v378 = vld [vmem:[#allocation10 + $0x28] sm:$0xf]
    %v379 = vld [vmem:[#allocation10 + $0x2c] sm:$0xf]
    %v380 = vld [vmem:[#allocation10 + $0x30] sm:$0xf]
    %v381 = vld [vmem:[#allocation10 + $0x34] sm:$0xf]
    %v382 = vld [vmem:[#allocation10 + $0x38] sm:$0xf]
    %v383 = vld [vmem:[#allocation10 + $0x3c] sm:$0xf]
    %v400 = vunpack.c.l.b16 %v368
    %v401 = vunpack.c.l.b16 %v369
    %v402 = vunpack.c.l.b16 %v370
    %v403 = vunpack.c.l.b16 %v371
    %v404 = vunpack.c.l.b16 %v372
    %v405 = vunpack.c.l.b16 %v373
    %v406 = vunpack.c.l.b16 %v374
    %v407 = vunpack.c.l.b16 %v375
    %v408 = vunpack.c.l.b16 %v376
    %v409 = vunpack.c.l.b16 %v377
    %v410 = vunpack.c.l.b16 %v378
    %v411 = vunpack.c.l.b16 %v379
    %v412 = vunpack.c.l.b16 %v380
    %v413 = vunpack.c.l.b16 %v381
    %v414 = vunpack.c.l.b16 %v382
    %v415 = vunpack.c.l.b16 %v383
    %v416 = vpack.c.b16 %v401, %v400
    %v417 = vpack.c.b16 %v403, %v402
    %v418 = vpack.c.b16 %v405, %v404
    %v419 = vpack.c.b16 %v407, %v406
    %v420 = vpack.c.b16 %v409, %v408
    %v421 = vpack.c.b16 %v411, %v410
    %v422 = vpack.c.b16 %v413, %v412
    %v423 = vpack.c.b16 %v415, %v414
    %432 = vmatprep.subr.bf16.mxu0 0
    %433 = vmatpush1.bf16.msra.mxu0 %v423
    %434 = vmatprep.subr.bf16.mxu0 0
    %435 = vmatpush1.bf16.msra.mxu0 %v422
    %436 = vmatprep.subr.bf16.mxu0 0
    %437 = vmatpush1.bf16.msra.mxu0 %v421
    %438 = vmatprep.subr.bf16.mxu0 0
    %439 = vmatpush1.bf16.msra.mxu0 %v420
    %440 = vmatprep.subr.bf16.mxu0 0
    %441 = vmatpush1.bf16.msra.mxu0 %v419
    %442 = vmatprep.subr.bf16.mxu0 0
    %443 = vmatpush1.bf16.msra.mxu0 %v418
    %444 = vmatprep.subr.bf16.mxu0 0
    %445 = vmatpush1.bf16.msra.mxu0 %v417
    %446 = vmatprep.subr.bf16.mxu0 0
    %447 = vmatpush1.bf16.msra.mxu0 %v416
    %448 = vmatprep.subr.bf16.mxu0 0
    %449 = vmatpush2.bf16.msra.mxu0 0
    %450 = vmatprep.subr.bf16.mxu0 0
    %451 = vmatpush2.bf16.msra.mxu0 0
    %452 = vmatprep.subr.bf16.mxu0 0
    %453 = vmatpush2.bf16.msra.mxu0 0
    %454 = vmatprep.subr.bf16.mxu0 0
    %455 = vmatpush2.bf16.msra.mxu0 0
    %456 = vmatprep.subr.bf16.mxu0 0
    %457 = vmatpush2.bf16.msra.mxu0 0
    %458 = vmatprep.subr.bf16.mxu0 0
    %459 = vmatpush2.bf16.msra.mxu0 0
    %460 = vmatprep.subr.bf16.mxu0 0
    %461 = vmatpush2.bf16.msra.mxu0 0
    %462 = vmatprep.subr.bf16.mxu0 0
    %463 = vmatpush2.bf16.msra.mxu0 0
    %464 = vmatprep.mubr.bf16.mxu0 0
    %465 = vmatmul.mubr.bf16.gmra.mxu0 %v262
    %v466 = vpop.f32.mrf.mxu0
    %v467 = vadd.f32 0.0, %v466
    %v468 = vpop.f32.mrf.mxu0
    %v469 = vpop.f32.mrf.mxu0
    %v470 = vadd.f32 0.0, %v469
    %v471 = vpop.f32.mrf.mxu0
    %472 = vdwg.mxu0
    %473 = vadd.xlane.f32.xlu0 %v99
    %v474 = vpop.xlane.xlu0 %473
    %475 = vadd.xlane.f32.xlu0 %v100
    %v476 = vpop.xlane.xlu0 %475
    %v477 = vmul.f32 %v474, 0.03125
    %v478 = vmul.f32 %v476, 0.03125
    %v479 = vsub.f32 %v99, %v477
    %v480 = vsub.f32 %v100, %v478
    %v481 = vmul.f32 %v479, %v479
    %v482 = vmul.f32 %v480, %v480
    %483 = vadd.xlane.f32.xlu0 %v481
    %v484 = vpop.xlane.xlu0 %483
    %485 = vadd.xlane.f32.xlu0 %v482
    %v486 = vpop.xlane.xlu0 %485
    %v487 = vmul.f32 %v477, %v477
    %v488 = vmul.f32 %v478, %v478
    %v489 = vmul.f32 %v487, 96.0
    %v490 = vmul.f32 %v488, 96.0
    %v491 = vsub.f32 %v484, %v489
    %v492 = vsub.f32 %v486, %v490
    %v493 = vmul.f32 %v491, 0.032258064
    %v494 = vmul.f32 %v492, 0.032258064
    %v495 = vmax.f32 %v493, 0.0
    %v496 = vmax.f32 %v494, 0.0
    %v497 = vrsqrt.pop %v495
    %v498 = vmul.f32 %v495, %v497
    %vm499 = vcmp.eq.f32.partialorder %v495, inf
    %v500 = vsel %vm499, %v495, %v498
    %vm501 = vcmp.eq.f32.partialorder %v495, 0.0
    %v502 = vand.u32 %v495, 2147483648
    %v503 = vsel %vm501, %v502, %v500
    %v504 = vrsqrt.pop %v496
    %v505 = vmul.f32 %v496, %v504
    %vm506 = vcmp.eq.f32.partialorder %v496, inf
    %v507 = vsel %vm506, %v496, %v505
    %vm508 = vcmp.eq.f32.partialorder %v496, 0.0
    %v509 = vand.u32 %v496, 2147483648
    %v510 = vsel %vm508, %v509, %v507
    %v511 = vadd.f32 %v503, 1e-06
    %v512 = vadd.f32 %v510, 1e-06
    %v513 = vrcp.pop %v511
    %v514 = vrcp.pop %v512
    %v515 = vmul.f32 %v511, %v513
    %v516 = vmul.f32 %v512, %v514
    %v517 = vsub.f32 2.0, %v515
    %v518 = vsub.f32 2.0, %v516
    %v519 = vmul.f32 %v513, %v517
    %v520 = vmul.f32 %v514, %v518
    %v522 = vlaneseq
    %v523 = vshrl.u32 %v522, 7
    %v524 = vsub.s32 0, %v523
    %v525 = vrot.slane %v105, %v524
    %v527 = vadd.f32 %v525, %v362
    %v528 = vadd.f32 %v525, %v365
    %v529 = vmul.f32 %v479, %v519
    %v530 = vmul.f32 %v480, %v520
    %v531 = vmul.f32 %v527, %v529
    %v532 = vmul.f32 %v528, %v530
    %v534 = vlaneseq
    %v535 = vshrl.u32 %v534, 7
    %v536 = vsub.s32 0, %v535
    %v537 = vrot.slane %v106, %v536
    %v539 = vadd.f32 %v537, %v467
    %v540 = vadd.f32 %v537, %v470
    %v541 = vadd.f32 %v531, %v539
    %v542 = vadd.f32 %v532, %v540
    %543 = vst [vmem:[#allocation11] sm:$0xff] %v541
    %544 = vst [vmem:[#allocation11 + $0x8] sm:$0xff] %v542
    // Predicated region
    $region54: #{tpu_custom_call.1} parent=1 // pred_check
      _
    $region55: #{tpu_custom_call.1} parent=1 // pred_check_branch
      %546 = sbr.rel (0) target = $region57
    $region56: #{tpu_custom_call.1} parent=1 // pred_region
      %s548 = ssub.s32 256, 256
      %549 = vsyncadd [#allocation4], %s548
      %s550 = sshll.u32 [#allocation11], 4
      %s551 = int_to_ptr.vmem [resolvable:$true] %s550
      %556 = dma.vmem_to_hbm [thread:$0]  %s551, 256, %s8, [#allocation4], 128, 128, 8
    $region57: #{tpu_custom_call.1} parent=1 // pred_fallthru
      _
    // Predicated region
    $region58: #{tpu_custom_call.1} parent=1 // pred_check
      _
    $region59: #{tpu_custom_call.1} parent=1 // pred_check_branch
      %558 = sbr.rel (0) target = $region61
    $region60: #{tpu_custom_call.1} parent=1 // pred_region
      %559 = dma.done [#allocation4], 256
    $region61: #{tpu_custom_call.1} parent=1 // pred_fallthru
      _
    %560 = vsyncpa [#allocation3], 1
    %561 = vsyncpa [#allocation6], 1
    %562 = vsyncpa [#allocation9], 1
    %563 = vsyncpa [#allocation4], 1

// kernel: tpu_custom_call.1
$region0: #{tpu_custom_call.1}
  #allocation0 [shape = 'u32[]', space=smem, size = 0x4, offset = 0x4, fixed_abs, tag = 'smem constant byte address 0x4 - core index']
  #allocation1 [shape = 'u32[144,128]{1,0:T(1,128)}', space=vmem, size = 0x12000, scoped, tag = 'internal scratch']
  %s0 = inlined_call_operand.hbm [shape: f32[16,128], index: 0, kind: input, shape index: {}]
  %s1 = inlined_call_operand.hbm [shape: f32[16,128], index: 1, kind: input, shape index: {}]
  %s2 = inlined_call_operand.hbm [shape: bf16[128,256], index: 2, kind: input, shape index: {}]
  %s3 = inlined_call_operand.vmem [shape: f32[1,256], index: 3, kind: input, shape index: {}]
  %s4 = inlined_call_operand.hbm [shape: bf16[128,128], index: 4, kind: input, shape index: {}]
  %s5 = inlined_call_operand.hbm [shape: bf16[128,128], index: 5, kind: input, shape index: {}]
  %s6 = inlined_call_operand.vmem [shape: f32[1,128], index: 6, kind: input, shape index: {}]
  %s7 = inlined_call_operand.vmem [shape: f32[1,128], index: 7, kind: input, shape index: {}]
  %s8 = inlined_call_operand.hbm [shape: f32[16,128], index: 8, kind: output, shape index: {}]
  %s9 = sld [smem:[#allocation0]]
  $region62: #{tpu_custom_call.1} parent=0
    _
  %s11 = ssub.s32 1, %s9
  %s12 = scalar_select 0, %s11, %s9
  $region1: #{tpu_custom_call.1} parent=0
    #allocation2 [shape = 'u8[8192]{0}', space=vmem, size = 0x2000, scoped, tag = 'input window, operand 0, single buffered']
    #allocation3 [shape = 's32[1]{0}', space=sflag, size = 0x4, scoped, tag = 'scoped memory for tpu_custom_call.1']
    #allocation4 [shape = 's32[1]{0}', space=sflag, size = 0x4, scoped, tag = 'scoped memory for tpu_custom_call.1']
    #allocation5 [shape = 'u8[8192]{0}', space=vmem, size = 0x2000, scoped, tag = 'input window, operand 1, single buffered']
    #allocation6 [shape = 's32[1]{0}', space=sflag, size = 0x4, scoped, tag = 'scoped memory for tpu_custom_call.1']
    #allocation7 [shape = 'u8[65536]{0}', space=vmem, size = 0x10000, scoped, tag = 'input window, operand 2, single buffered']
    #allocation8 [shape = 'u8[32768]{0}', space=vmem, size = 0x8000, scoped, tag = 'input window, operand 4, single buffered']
    #allocation9 [shape = 's32[1]{0}', space=sflag, size = 0x4, scoped, tag = 'scoped memory for tpu_custom_call.1']
    #allocation10 [shape = 'u8[32768]{0}', space=vmem, size = 0x8000, scoped, tag = 'input window, operand 5, single buffered']
    #allocation11 [shape = 'u8[8192]{0}', space=vmem, size = 0x2000, scoped, tag = 'output window, operand 0, single buffered']
    %13 = vsyncpa [#allocation3], 0
    %14 = vsyncpa [#allocation6], 0
    %15 = vsyncpa [#allocation9], 0
    %16 = vsyncpa [#allocation4], 0
    // Predicated region
    $region2: #{tpu_custom_call.1} parent=1 // pred_check
      _
    $region3: #{tpu_custom_call.1} parent=1 // pred_check_branch
      %18 = sbr.rel (0) target = $region5
    $region4: #{tpu_custom_call.1} parent=1 // pred_region
      %s20 = ssub.s32 256, 256
      %21 = vsyncadd [#allocation3], %s20
      %s22 = sshll.u32 [#allocation2], 4
      %s23 = int_to_ptr.vmem [resolvable:$true] %s22
      %28 = dma.hbm_to_vmem [thread:$0]  %s0, 256, %s23, [#allocation3], 128, 128, 8
    $region5: #{tpu_custom_call.1} parent=1 // pred_fallthru
      _
    // Predicated region
    $region6: #{tpu_custom_call.1} parent=1 // pred_check
      _
    $region7: #{tpu_custom_call.1} parent=1 // pred_check_branch
      %30 = sbr.rel (0) target = $region9
    $region8: #{tpu_custom_call.1} parent=1 // pred_region
      %s32 = ssub.s32 256, 256
      %33 = vsyncadd [#allocation6], %s32
      %s34 = sshll.u32 [#allocation5], 4
      %s35 = int_to_ptr.vmem [resolvable:$true] %s34
      %40 = dma.hbm_to_vmem [thread:$0]  %s1, 256, %s35, [#allocation6], 128, 128, 8
    $region9: #{tpu_custom_call.1} parent=1 // pred_fallthru
      _
    // Predicated region
    $region10: #{tpu_custom_call.1} parent=1 // pred_check
      _
    $region11: #{tpu_custom_call.1} parent=1 // pred_check_branch
      %42 = sbr.rel (0) target = $region13
    $region12: #{tpu_custom_call.1} parent=1 // pred_region
      %s44 = ssub.s32 2048, 2048
      %45 = vsyncadd [#allocation6], %s44
      %s46 = sshll.u32 [#allocation7], 4
      %s47 = int_to_ptr.vmem [resolvable:$true] %s46
      %52 = dma.hbm_to_vmem [thread:$0]  %s2, 2048, %s47, [#allocation6], 128, 128, 8
    $region13: #{tpu_custom_call.1} parent=1 // pred_fallthru
      _
    // Predicated region
    $region14: #{tpu_custom_call.1} parent=1 // pred_check
      _
    $region15: #{tpu_custom_call.1} parent=1 // pred_check_branch
      %54 = sbr.rel (0) target = $region17
    $region16: #{tpu_custom_call.1} parent=1 // pred_region
      _
    $region17: #{tpu_custom_call.1} parent=1 // pred_fallthru
      _
    // Predicated region
    $region18: #{tpu_custom_call.1} parent=1 // pred_check
      _
    $region19: #{tpu_custom_call.1} parent=1 // pred_check_branch
      %56 = sbr.rel (0) target = $region21
    $region20: #{tpu_custom_call.1} parent=1 // pred_region
      %s58 = ssub.s32 1024, 1024
      %59 = vsyncadd [#allocation9], %s58
      %s60 = sshll.u32 [#allocation8], 4
      %s61 = int_to_ptr.vmem [resolvable:$true] %s60
      %66 = dma.hbm_to_vmem [thread:$0]  %s4, 1024, %s61, [#allocation9], 64, 64, 4
    $region21: #{tpu_custom_call.1} parent=1 // pred_fallthru
      _
    // Predicated region
    $region22: #{tpu_custom_call.1} parent=1 // pred_check
      _
    $region23: #{tpu_custom_call.1} parent=1 // pred_check_branch
      %68 = sbr.rel (0) target = $region25
    $region24: #{tpu_custom_call.1} parent=1 // pred_region
      %s70 = ssub.s32 1024, 1024
      %71 = vsyncadd [#allocation9], %s70
      %s72 = sshll.u32 [#allocation10], 4
      %s73 = int_to_ptr.vmem [resolvable:$true] %s72
      %78 = dma.hbm_to_vmem [thread:$0]  %s5, 1024, %s73, [#allocation9], 64, 64, 4
    $region25: #{tpu_custom_call.1} parent=1 // pred_fallthru
      _
    // Predicated region
    $region26: #{tpu_custom_call.1} parent=1 // pred_check
      _
    $region27: #{tpu_custom_call.1} parent=1 // pred_check_branch
      %80 = sbr.rel (0) target = $region29
    $region28: #{tpu_custom_call.1} parent=1 // pred_region
      _
    $region29: #{tpu_custom_call.1} parent=1 // pred_fallthru
      _
    // Predicated region
    $region30: #{tpu_custom_call.1} parent=1 // pred_check
      _
    $region31: #{tpu_custom_call.1} parent=1 // pred_check_branch
      %82 = sbr.rel (0) target = $region33
    $region32: #{tpu_custom_call.1} parent=1 // pred_region
      _
    $region33: #{tpu_custom_call.1} parent=1 // pred_fallthru
      _
    // Predicated region
    $region34: #{tpu_custom_call.1} parent=1 // pred_check
      _
    $region35: #{tpu_custom_call.1} parent=1 // pred_check_branch
      %84 = sbr.rel (0) target = $region37
    $region36: #{tpu_custom_call.1} parent=1 // pred_region
      %85 = dma.done [#allocation3], 256
    $region37: #{tpu_custom_call.1} parent=1 // pred_fallthru
      _
    // Predicated region
    $region38: #{tpu_custom_call.1} parent=1 // pred_check
      _
    $region39: #{tpu_custom_call.1} parent=1 // pred_check_branch
      %87 = sbr.rel (0) target = $region41
    $region40: #{tpu_custom_call.1} parent=1 // pred_region
      %88 = dma.done [#allocation6], 256
    $region41: #{tpu_custom_call.1} parent=1 // pred_fallthru
      _
    // Predicated region
    $region42: #{tpu_custom_call.1} parent=1 // pred_check
      _
    $region43: #{tpu_custom_call.1} parent=1 // pred_check_branch
      %90 = sbr.rel (0) target = $region45
    $region44: #{tpu_custom_call.1} parent=1 // pred_region
      %91 = dma.done [#allocation6], 2048
    $region45: #{tpu_custom_call.1} parent=1 // pred_fallthru
      _
    // Predicated region
    $region46: #{tpu_custom_call.1} parent=1 // pred_check
      _
    $region47: #{tpu_custom_call.1} parent=1 // pred_check_branch
      %93 = sbr.rel (0) target = $region49
    $region48: #{tpu_custom_call.1} parent=1 // pred_region
      %94 = dma.done [#allocation9], 1024
    $region49: #{tpu_custom_call.1} parent=1 // pred_fallthru
      _
    // Predicated region
    $region50: #{tpu_custom_call.1} parent=1 // pred_check
      _
    $region51: #{tpu_custom_call.1} parent=1 // pred_check_branch
      %96 = sbr.rel (0) target = $region53
    $region52: #{tpu_custom_call.1} parent=1 // pred_region
      %97 = dma.done [#allocation9], 1024
    $region53: #{tpu_custom_call.1} parent=1 // pred_fallthru
      _
    %v99 = vld [vmem:[#allocation2] sm:$0xff]
    %v100 = vld [vmem:[#allocation2 + $0x8] sm:$0xff]
    %v101 = vld [vmem:[#allocation5] sm:$0xff]
    %v102 = vld [vmem:[#allocation5 + $0x8] sm:$0xff]
    %v103 = vpack.c.bf16 %v102, %v101
    %v104 = vld [vmem:[%s3] sm:$0x3]
    %v105 = vld [vmem:[%s6] sm:$0x1]
    %v106 = vld [vmem:[%s7] sm:$0x1]
    %v107 = vld [vmem:[#allocation7] sm:$0xff]
    %v108 = vld [vmem:[#allocation7 + $0x8] sm:$0xff]
    %v109 = vld [vmem:[#allocation7 + $0x10] sm:$0xff]
    %v110 = vld [vmem:[#allocation7 + $0x18] sm:$0xff]
    %v111 = vld [vmem:[#allocation7 + $0x20] sm:$0xff]
    %v112 = vld [vmem:[#allocation7 + $0x28] sm:$0xff]
    %v113 = vld [vmem:[#allocation7 + $0x30] sm:$0xff]
    %v114 = vld [vmem:[#allocation7 + $0x38] sm:$0xff]
    %v115 = vld [vmem:[#allocation7 + $0x40] sm:$0xff]
    %v116 = vld [vmem:[#allocation7 + $0x48] sm:$0xff]
    %v117 = vld [vmem:[#allocation7 + $0x50] sm:$0xff]
    %v118 = vld [vmem:[#allocation7 + $0x58] sm:$0xff]
    %v119 = vld [vmem:[#allocation7 + $0x60] sm:$0xff]
    %v120 = vld [vmem:[#allocation7 + $0x68] sm:$0xff]
    %v121 = vld [vmem:[#allocation7 + $0x70] sm:$0xff]
    %v122 = vld [vmem:[#allocation7 + $0x78] sm:$0xff]
    %v124 = vlaneseq
    %v125 = vshrl.u32 %v124, 7
    %v126 = vsub.s32 0, %v125
    %v127 = vrot.slane %v104, %v126
    %v128 = vlaneseq
    %v129 = vshrl.u32 %v128, 7
    %v130 = vsub.s32 1, %v129
    %v131 = vrot.slane %v104, %v130
    %v150 = vunpack.c.l.b16 %v107
    %v151 = vunpack.c.h.b16 %v107
    %v152 = vunpack.c.l.b16 %v108
    %v153 = vunpack.c.h.b16 %v108
    %v154 = vunpack.c.l.b16 %v109
    %v155 = vunpack.c.h.b16 %v109
    %v156 = vunpack.c.l.b16 %v110
    %v157 = vunpack.c.h.b16 %v110
    %v158 = vunpack.c.l.b16 %v111
    %v159 = vunpack.c.h.b16 %v111
    %v160 = vunpack.c.l.b16 %v112
    %v161 = vunpack.c.h.b16 %v112
    %v162 = vunpack.c.l.b16 %v113
    %v163 = vunpack.c.h.b16 %v113
    %v164 = vunpack.c.l.b16 %v114
    %v165 = vunpack.c.h.b16 %v114
    %v166 = vunpack.c.l.b16 %v115
    %v167 = vunpack.c.h.b16 %v115
    %v168 = vunpack.c.l.b16 %v116
    %v169 = vunpack.c.h.b16 %v116
    %v170 = vunpack.c.l.b16 %v117
    %v171 = vunpack.c.h.b16 %v117
    %v172 = vunpack.c.l.b16 %v118
    %v173 = vunpack.c.h.b16 %v118
    %v174 = vunpack.c.l.b16 %v119
    %v175 = vunpack.c.h.b16 %v119
    %v176 = vunpack.c.l.b16 %v120
    %v177 = vunpack.c.h.b16 %v120
    %v178 = vunpack.c.l.b16 %v121
    %v179 = vunpack.c.h.b16 %v121
    %v180 = vunpack.c.l.b16 %v122
    %v181 = vunpack.c.h.b16 %v122
    %v182 = vpack.c.b16 %v152, %v150
    %v183 = vpack.c.b16 %v153, %v151
    %v184 = vpack.c.b16 %v156, %v154
    %v185 = vpack.c.b16 %v157, %v155
    %v186 = vpack.c.b16 %v160, %v158
    %v187 = vpack.c.b16 %v161, %v159
    %v188 = vpack.c.b16 %v164, %v162
    %v189 = vpack.c.b16 %v165, %v163
    %v190 = vpack.c.b16 %v168, %v166
    %v191 = vpack.c.b16 %v169, %v167
    %v192 = vpack.c.b16 %v172, %v170
    %v193 = vpack.c.b16 %v173, %v171
    %v194 = vpack.c.b16 %v176, %v174
    %v195 = vpack.c.b16 %v177, %v175
    %v196 = vpack.c.b16 %v180, %v178
    %v197 = vpack.c.b16 %v181, %v179
    %214 = vmatprep.subr.bf16.mxu0 %v197
    %215 = vmatpush1.bf16.msra.mxu0 %v196
    %216 = vmatprep.subr.bf16.mxu0 %v195
    %217 = vmatpush1.bf16.msra.mxu0 %v194
    %218 = vmatprep.subr.bf16.mxu0 %v193
    %219 = vmatpush1.bf16.msra.mxu0 %v192
    %220 = vmatprep.subr.bf16.mxu0 %v191
    %221 = vmatpush1.bf16.msra.mxu0 %v190
    %222 = vmatprep.subr.bf16.mxu0 %v189
    %223 = vmatpush1.bf16.msra.mxu0 %v188
    %224 = vmatprep.subr.bf16.mxu0 %v187
    %225 = vmatpush1.bf16.msra.mxu0 %v186
    %226 = vmatprep.subr.bf16.mxu0 %v185
    %227 = vmatpush1.bf16.msra.mxu0 %v184
    %228 = vmatprep.subr.bf16.mxu0 %v183
    %229 = vmatpush1.bf16.msra.mxu0 %v182
    %230 = vmatprep.subr.bf16.mxu0 0
    %231 = vmatpush2.bf16.msra.mxu0 0
    %232 = vmatprep.subr.bf16.mxu0 0
    %233 = vmatpush2.bf16.msra.mxu0 0
    %234 = vmatprep.subr.bf16.mxu0 0
    %235 = vmatpush2.bf16.msra.mxu0 0
    %236 = vmatprep.subr.bf16.mxu0 0
    %237 = vmatpush2.bf16.msra.mxu0 0
    %238 = vmatprep.subr.bf16.mxu0 0
    %239 = vmatpush2.bf16.msra.mxu0 0
    %240 = vmatprep.subr.bf16.mxu0 0
    %241 = vmatpush2.bf16.msra.mxu0 0
    %242 = vmatprep.subr.bf16.mxu0 0
    %243 = vmatpush2.bf16.msra.mxu0 0
    %244 = vmatprep.subr.bf16.mxu0 0
    %245 = vmatpush2.bf16.msra.mxu0 0
    %246 = vmatprep.mubr.bf16.mxu0 0
    %247 = vmatmul.mubr.bf16.gmra.mxu0 %v103
    %v248 = vpop.f32.mrf.mxu0
    %v249 = vadd.f32 %v127, %v248
    %v250 = vpop.f32.mrf.mxu0
    %v251 = vadd.f32 %v131, %v250
    %v252 = vpop.f32.mrf.mxu0
    %v253 = vadd.f32 %v127, %v252
    %v254 = vpop.f32.mrf.mxu0
    %v255 = vadd.f32 %v131, %v254
    %256 = vdwg.mxu0
    %v257 = vmax.f32 %v249, 0.0
    %v258 = vmax.f32 %v251, 0.0
    %v259 = vmax.f32 %v253, 0.0
    %v260 = vmax.f32 %v255, 0.0
    %v261 = vpack.c.bf16 %v259, %v257
    %v262 = vpack.c.bf16 %v260, %v258
    %v263 = vld [vmem:[#allocation8] sm:$0xf]
    %v264 = vld [vmem:[#allocation8 + $0x4] sm:$0xf]
    %v265 = vld [vmem:[#allocation8 + $0x8] sm:$0xf]
    %v266 = vld [vmem:[#allocation8 + $0xc] sm:$0xf]
    %v267 = vld [vmem:[#allocation8 + $0x10] sm:$0xf]
    %v268 = vld [vmem:[#allocation8 + $0x14] sm:$0xf]
    %v269 = vld [vmem:[#allocation8 + $0x18] sm:$0xf]
    %v270 = vld [vmem:[#allocation8 + $0x1c] sm:$0xf]
    %v271 = vld [vmem:[#allocation8 + $0x20] sm:$0xf]
    %v272 = vld [vmem:[#allocation8 + $0x24] sm:$0xf]
    %v273 = vld [vmem:[#allocation8 + $0x28] sm:$0xf]
    %v274 = vld [vmem:[#allocation8 + $0x2c] sm:$0xf]
    %v275 = vld [vmem:[#allocation8 + $0x30] sm:$0xf]
    %v276 = vld [vmem:[#allocation8 + $0x34] sm:$0xf]
    %v277 = vld [vmem:[#allocation8 + $0x38] sm:$0xf]
    %v278 = vld [vmem:[#allocation8 + $0x3c] sm:$0xf]
    %v295 = vunpack.c.l.b16 %v263
    %v296 = vunpack.c.l.b16 %v264
    %v297 = vunpack.c.l.b16 %v265
    %v298 = vunpack.c.l.b16 %v266
    %v299 = vunpack.c.l.b16 %v267
    %v300 = vunpack.c.l.b16 %v268
    %v301 = vunpack.c.l.b16 %v269
    %v302 = vunpack.c.l.b16 %v270
    %v303 = vunpack.c.l.b16 %v271
    %v304 = vunpack.c.l.b16 %v272
    %v305 = vunpack.c.l.b16 %v273
    %v306 = vunpack.c.l.b16 %v274
    %v307 = vunpack.c.l.b16 %v275
    %v308 = vunpack.c.l.b16 %v276
    %v309 = vunpack.c.l.b16 %v277
    %v310 = vunpack.c.l.b16 %v278
    %v311 = vpack.c.b16 %v296, %v295
    %v312 = vpack.c.b16 %v298, %v297
    %v313 = vpack.c.b16 %v300, %v299
    %v314 = vpack.c.b16 %v302, %v301
    %v315 = vpack.c.b16 %v304, %v303
    %v316 = vpack.c.b16 %v306, %v305
    %v317 = vpack.c.b16 %v308, %v307
    %v318 = vpack.c.b16 %v310, %v309
    %327 = vmatprep.subr.bf16.mxu0 0
    %328 = vmatpush1.bf16.msra.mxu0 %v318
    %329 = vmatprep.subr.bf16.mxu0 0
    %330 = vmatpush1.bf16.msra.mxu0 %v317
    %331 = vmatprep.subr.bf16.mxu0 0
    %332 = vmatpush1.bf16.msra.mxu0 %v316
    %333 = vmatprep.subr.bf16.mxu0 0
    %334 = vmatpush1.bf16.msra.mxu0 %v315
    %335 = vmatprep.subr.bf16.mxu0 0
    %336 = vmatpush1.bf16.msra.mxu0 %v314
    %337 = vmatprep.subr.bf16.mxu0 0
    %338 = vmatpush1.bf16.msra.mxu0 %v313
    %339 = vmatprep.subr.bf16.mxu0 0
    %340 = vmatpush1.bf16.msra.mxu0 %v312
    %341 = vmatprep.subr.bf16.mxu0 0
    %342 = vmatpush1.bf16.msra.mxu0 %v311
    %343 = vmatprep.subr.bf16.mxu0 0
    %344 = vmatpush2.bf16.msra.mxu0 0
    %345 = vmatprep.subr.bf16.mxu0 0
    %346 = vmatpush2.bf16.msra.mxu0 0
    %347 = vmatprep.subr.bf16.mxu0 0
    %348 = vmatpush2.bf16.msra.mxu0 0
    %349 = vmatprep.subr.bf16.mxu0 0
    %350 = vmatpush2.bf16.msra.mxu0 0
    %351 = vmatprep.subr.bf16.mxu0 0
    %352 = vmatpush2.bf16.msra.mxu0 0
    %353 = vmatprep.subr.bf16.mxu0 0
    %354 = vmatpush2.bf16.msra.mxu0 0
    %355 = vmatprep.subr.bf16.mxu0 0
    %356 = vmatpush2.bf16.msra.mxu0 0
    %357 = vmatprep.subr.bf16.mxu0 0
    %358 = vmatpush2.bf16.msra.mxu0 0
    %359 = vmatprep.mubr.bf16.mxu0 0
    %360 = vmatmul.mubr.bf16.gmra.mxu0 %v261
    %v361 = vpop.f32.mrf.mxu0
    %v362 = vadd.f32 0.0, %v361
    %v363 = vpop.f32.mrf.mxu0
    %v364 = vpop.f32.mrf.mxu0
    %v365 = vadd.f32 0.0, %v364
    %v366 = vpop.f32.mrf.mxu0
    %367 = vdwg.mxu0
    %v368 = vld [vmem:[#allocation10] sm:$0xf]
    %v369 = vld [vmem:[#allocation10 + $0x4] sm:$0xf]
    %v370 = vld [vmem:[#allocation10 + $0x8] sm:$0xf]
    %v371 = vld [vmem:[#allocation10 + $0xc] sm:$0xf]
    %v372 = vld [vmem:[#allocation10 + $0x10] sm:$0xf]
    %v373 = vld [vmem:[#allocation10 + $0x14] sm:$0xf]
    %v374 = vld [vmem:[#allocation10 + $0x18] sm:$0xf]
    %v375 = vld [vmem:[#allocation10 + $0x1c] sm:$0xf]
    %v376 = vld [vmem:[#allocation10 + $0x20] sm:$0xf]
    %v377 = vld [vmem:[#allocation10 + $0x24] sm:$0xf]
    %v378 = vld [vmem:[#allocation10 + $0x28] sm:$0xf]
    %v379 = vld [vmem:[#allocation10 + $0x2c] sm:$0xf]
    %v380 = vld [vmem:[#allocation10 + $0x30] sm:$0xf]
    %v381 = vld [vmem:[#allocation10 + $0x34] sm:$0xf]
    %v382 = vld [vmem:[#allocation10 + $0x38] sm:$0xf]
    %v383 = vld [vmem:[#allocation10 + $0x3c] sm:$0xf]
    %v400 = vunpack.c.l.b16 %v368
    %v401 = vunpack.c.l.b16 %v369
    %v402 = vunpack.c.l.b16 %v370
    %v403 = vunpack.c.l.b16 %v371
    %v404 = vunpack.c.l.b16 %v372
    %v405 = vunpack.c.l.b16 %v373
    %v406 = vunpack.c.l.b16 %v374
    %v407 = vunpack.c.l.b16 %v375
    %v408 = vunpack.c.l.b16 %v376
    %v409 = vunpack.c.l.b16 %v377
    %v410 = vunpack.c.l.b16 %v378
    %v411 = vunpack.c.l.b16 %v379
    %v412 = vunpack.c.l.b16 %v380
    %v413 = vunpack.c.l.b16 %v381
    %v414 = vunpack.c.l.b16 %v382
    %v415 = vunpack.c.l.b16 %v383
    %v416 = vpack.c.b16 %v401, %v400
    %v417 = vpack.c.b16 %v403, %v402
    %v418 = vpack.c.b16 %v405, %v404
    %v419 = vpack.c.b16 %v407, %v406
    %v420 = vpack.c.b16 %v409, %v408
    %v421 = vpack.c.b16 %v411, %v410
    %v422 = vpack.c.b16 %v413, %v412
    %v423 = vpack.c.b16 %v415, %v414
    %432 = vmatprep.subr.bf16.mxu0 0
    %433 = vmatpush1.bf16.msra.mxu0 %v423
    %434 = vmatprep.subr.bf16.mxu0 0
    %435 = vmatpush1.bf16.msra.mxu0 %v422
    %436 = vmatprep.subr.bf16.mxu0 0
    %437 = vmatpush1.bf16.msra.mxu0 %v421
    %438 = vmatprep.subr.bf16.mxu0 0
    %439 = vmatpush1.bf16.msra.mxu0 %v420
    %440 = vmatprep.subr.bf16.mxu0 0
    %441 = vmatpush1.bf16.msra.mxu0 %v419
    %442 = vmatprep.subr.bf16.mxu0 0
    %443 = vmatpush1.bf16.msra.mxu0 %v418
    %444 = vmatprep.subr.bf16.mxu0 0
    %445 = vmatpush1.bf16.msra.mxu0 %v417
    %446 = vmatprep.subr.bf16.mxu0 0
    %447 = vmatpush1.bf16.msra.mxu0 %v416
    %448 = vmatprep.subr.bf16.mxu0 0
    %449 = vmatpush2.bf16.msra.mxu0 0
    %450 = vmatprep.subr.bf16.mxu0 0
    %451 = vmatpush2.bf16.msra.mxu0 0
    %452 = vmatprep.subr.bf16.mxu0 0
    %453 = vmatpush2.bf16.msra.mxu0 0
    %454 = vmatprep.subr.bf16.mxu0 0
    %455 = vmatpush2.bf16.msra.mxu0 0
    %456 = vmatprep.subr.bf16.mxu0 0
    %457 = vmatpush2.bf16.msra.mxu0 0
    %458 = vmatprep.subr.bf16.mxu0 0
    %459 = vmatpush2.bf16.msra.mxu0 0
    %460 = vmatprep.subr.bf16.mxu0 0
    %461 = vmatpush2.bf16.msra.mxu0 0
    %462 = vmatprep.subr.bf16.mxu0 0
    %463 = vmatpush2.bf16.msra.mxu0 0
    %464 = vmatprep.mubr.bf16.mxu0 0
    %465 = vmatmul.mubr.bf16.gmra.mxu0 %v262
    %v466 = vpop.f32.mrf.mxu0
    %v467 = vadd.f32 0.0, %v466
    %v468 = vpop.f32.mrf.mxu0
    %v469 = vpop.f32.mrf.mxu0
    %v470 = vadd.f32 0.0, %v469
    %v471 = vpop.f32.mrf.mxu0
    %472 = vdwg.mxu0
    %473 = vadd.xlane.f32.xlu0 %v99
    %v474 = vpop.xlane.xlu0 %473
    %475 = vadd.xlane.f32.xlu0 %v100
    %v476 = vpop.xlane.xlu0 %475
    %v477 = vmul.f32 %v474, 0.03125
    %v478 = vmul.f32 %v476, 0.03125
    %v479 = vsub.f32 %v99, %v477
    %v480 = vsub.f32 %v100, %v478
    %v481 = vmul.f32 %v479, %v479
    %v482 = vmul.f32 %v480, %v480
    %483 = vadd.xlane.f32.xlu0 %v481
    %v484 = vpop.xlane.xlu0 %483
    %485 = vadd.xlane.f32.xlu0 %v482
    %v486 = vpop.xlane.xlu0 %485
    %v487 = vmul.f32 %v477, %v477
    %v488 = vmul.f32 %v478, %v478
    %v489 = vmul.f32 %v487, 96.0
    %v490 = vmul.f32 %v488, 96.0
    %v491 = vsub.f32 %v484, %v489
    %v492 = vsub.f32 %v486, %v490
    %v493 = vmul.f32 %v491, 0.032258064
    %v494 = vmul.f32 %v492, 0.032258064
    %v495 = vmax.f32 %v493, 0.0
    %v496 = vmax.f32 %v494, 0.0
    %v497 = vrsqrt.pop %v495
    %v498 = vmul.f32 %v495, %v497
    %vm499 = vcmp.eq.f32.partialorder %v495, inf
    %v500 = vsel %vm499, %v495, %v498
    %vm501 = vcmp.eq.f32.partialorder %v495, 0.0
    %v502 = vand.u32 %v495, 2147483648
    %v503 = vsel %vm501, %v502, %v500
    %v504 = vrsqrt.pop %v496
    %v505 = vmul.f32 %v496, %v504
    %vm506 = vcmp.eq.f32.partialorder %v496, inf
    %v507 = vsel %vm506, %v496, %v505
    %vm508 = vcmp.eq.f32.partialorder %v496, 0.0
    %v509 = vand.u32 %v496, 2147483648
    %v510 = vsel %vm508, %v509, %v507
    %v511 = vadd.f32 %v503, 1e-06
    %v512 = vadd.f32 %v510, 1e-06
    %v513 = vrcp.pop %v511
    %v514 = vrcp.pop %v512
    %v515 = vmul.f32 %v511, %v513
    %v516 = vmul.f32 %v512, %v514
    %v517 = vsub.f32 2.0, %v515
    %v518 = vsub.f32 2.0, %v516
    %v519 = vmul.f32 %v513, %v517
    %v520 = vmul.f32 %v514, %v518
    %v522 = vlaneseq
    %v523 = vshrl.u32 %v522, 7
    %v524 = vsub.s32 0, %v523
    %v525 = vrot.slane %v105, %v524
    %v527 = vadd.f32 %v525, %v362
    %v528 = vadd.f32 %v525, %v365
    %v529 = vmul.f32 %v479, %v519
    %v530 = vmul.f32 %v480, %v520
    %v531 = vmul.f32 %v527, %v529
    %v532 = vmul.f32 %v528, %v530
    %v534 = vlaneseq
    %v535 = vshrl.u32 %v534, 7
    %v536 = vsub.s32 0, %v535
    %v537 = vrot.slane %v106, %v536
    %v539 = vadd.f32 %v537, %v467
    %v540 = vadd.f32 %v537, %v470
    %v541 = vadd.f32 %v531, %v539
    %v542 = vadd.f32 %v532, %v540
    %543 = vst [vmem:[#allocation11] sm:$0xff] %v541
    %544 = vst [vmem:[#allocation11 + $0x8] sm:$0xff] %v542
    // Predicated region
    $region54: #{tpu_custom_call.1} parent=1 // pred_check
      _
    $region55: #{tpu_custom_call.1} parent=1 // pred_check_branch
      %546 = sbr.rel (0) target = $region57
    $region56: #{tpu_custom_call.1} parent=1 // pred_region
      %s548 = ssub.s32 256, 256
      %549 = vsyncadd [#allocation4], %s548
      %s550 = sshll.u32 [#allocation11], 4
      %s551 = int_to_ptr.vmem [resolvable:$true] %s550
      %556 = dma.vmem_to_hbm [thread:$0]  %s551, 256, %s8, [#allocation4], 128, 128, 8
    $region57: #{tpu_custom_call.1} parent=1 // pred_fallthru
      _
    // Predicated region
    $region58: #{tpu_custom_call.1} parent=1 // pred_check
      _
    $region59: #{tpu_custom_call.1} parent=1 // pred_check_branch
      %558 = sbr.rel (0) target = $region61
    $region60: #{tpu_custom_call.1} parent=1 // pred_region
      %559 = dma.done [#allocation4], 256
    $region61: #{tpu_custom_call.1} parent=1 // pred_fallthru
      _
    %560 = vsyncpa [#allocation3], 1
    %561 = vsyncpa [#allocation6], 1
    %562 = vsyncpa [#allocation9], 1
    %563 = vsyncpa [#allocation4], 1

</llo_original>
